<compile_context>
chip_gen: v5e
topology: v5e:2x2
jax: 0.10.0
libtpu: 0.0.40
codegen_flags: <defaults>
</compile_context>

<pallas_src>
import math
import jax
import jax.numpy as jnp
from jax.experimental import pallas as pl
from jax.experimental.pallas import tpu as pltpu


# ---------------------------------------------------------------------------
# Fused MHA kernel: one grid step == one block of Bb batch elements.
# ---------------------------------------------------------------------------
def _make_mha_kernel(heads, mxu_dtype=None):
    def kernel(q_ref, k_ref, v_ref, bias_ref, wqkv_ref, bqkv_ref, wo_ref, bo_ref, o_ref):
        # q/k/v: (Bb, S, D); bias: (Bb, Sq_m, S) f32 additive; wqkv: (3, D, D);
        # bqkv: (3, D); wo: (D, D); bo: (1, D); o: (Bb, S, D)
        Bb, S, D = q_ref.shape
        d_k = D // heads
        scale = 1.0 / math.sqrt(d_k)

        def cast(x):
            # Optional bf16 feed to the MXU (v6e/v7x); accumulation stays f32.
            return x if mxu_dtype is None else x.astype(mxu_dtype)

        bqkv = bqkv_ref[...].astype(jnp.float32)     # (3, D)
        bias = bias_ref[...]                         # hoisted once, reused by every head

        # ---- Q/K/V projections on the flattened (Bb*S, D) row block ----
        def proj(x_ref, idx):
            x = cast(x_ref[...].reshape(Bb * S, D))
            y = jnp.dot(x, cast(wqkv_ref[idx]), preferred_element_type=jnp.float32)
            return (y + bqkv[idx:idx + 1]).reshape(Bb, S, D)

        q = proj(q_ref, 0)
        k = proj(k_ref, 1)
        v = proj(v_ref, 2)

        # ---- Per-head attention, batched over the Bb batch rows ----
        # TODO(synk): for S >= 128, tile queries and loop key blocks with an online
        # softmax accumulator in VMEM scratch instead of holding the (Bb, S, S) scores.
        ctx_parts = []
        for h in range(heads):
            sl = slice(h * d_k, (h + 1) * d_k)
            qh, kh, vh = q[..., sl], k[..., sl], v[..., sl]
            # scores = qh @ kh^T / sqrt(d_k) + additive mask bias (broadcast over queries)
            s = jnp.einsum("bqd,bkd->bqk", cast(qh), cast(kh),
                           preferred_element_type=jnp.float32) * scale + bias
            # numerically-stable softmax over keys (masked logits underflow to exactly 0)
            s = s - jnp.max(s, axis=-1, keepdims=True)
            e = jnp.exp(s)
            p = e * pl.reciprocal(jnp.sum(e, axis=-1, keepdims=True), approx=True)
            # TODO(synk): nn.Dropout(p=0.1) on attention weights omitted (eval-mode identity).
            ctx_parts.append(jnp.einsum("bqk,bkd->bqd", cast(p), cast(vh),
                                        preferred_element_type=jnp.float32))

        # (Bb*S, D) lane-dense context, then output projection; single unmasked store.
        ctx = jnp.concatenate(ctx_parts, axis=-1).reshape(Bb * S, D)
        out = jnp.dot(cast(ctx), cast(wo_ref[...]),
                      preferred_element_type=jnp.float32) + bo_ref[...].astype(jnp.float32)
        o_ref[...] = out.reshape(Bb, S, D).astype(o_ref.dtype)

    return kernel


def multi_headed_attention(query, key, value, mask, params, heads,
                           *, mxu_dtype=None, batch_block=None):
    B, S, D = query.shape
    assert D % heads == 0

    # Batch block: largest divisor of B up to 8 by default (whole batch at small B).
    # For realistic B on v7x, pick Bb = B//2 (or less) so both TensorCores get a step.
    if batch_block is None:
        batch_block = 1
        for cand in range(min(B, 8), 0, -1):
            if B % cand == 0:
                batch_block = cand
                break
    Bb = batch_block
    assert B % Bb == 0, "batch_block must divide batch"

    # Stack QKV weights/biases so the kernel gets one resident weight tensor each.
    w_qkv = jnp.stack([params["wq"], params["wk"], params["wv"]], axis=0)   # (3, D, D)
    b_qkv = jnp.stack([params["bq"], params["bk"], params["bv"]], axis=0)   # (3, D)
    wo = params["wo"]
    bo = params["bo"].reshape(1, D)

    # Compact additive mask bias.  torch broadcasts `mask` over the head dim; keep only
    # the query extent the mask actually has (1 for the usual (B,1,1,S) padding mask).
    m = jnp.asarray(mask)
    if m.ndim < 4:
        m = m.reshape((1,) * (4 - m.ndim) + m.shape)
    # TODO(synk): per-head (non-broadcast) masks would need an (H,...) bias path.
    assert m.shape[1] == 1, "per-head masks not supported"
    sq_m = m.shape[2]
    m3 = jnp.broadcast_to(m, (B, 1, sq_m, S)).reshape(B, sq_m, S)
    bias = jnp.where(m3 == 0, jnp.float32(-10000.0), jnp.float32(0.0))

    # Advisory cost estimate (projections + scores + p@v + output projection).
    flops = 2 * B * S * D * (4 * D + 2 * S)
    transcendentals = B * heads * S * (S + 1)
    bytes_accessed = 4 * (4 * B * S * D + B * sq_m * S + 4 * D * D + 4 * D)

    kernel = _make_mha_kernel(heads, mxu_dtype=mxu_dtype)
    return pl.pallas_call(
        kernel,
        out_shape=jax.ShapeDtypeStruct((B, S, D), query.dtype),
        grid=(B // Bb,),
        in_specs=[
            pl.BlockSpec((Bb, S, D), lambda b: (b, 0, 0)),      # query block
            pl.BlockSpec((Bb, S, D), lambda b: (b, 0, 0)),      # key block
            pl.BlockSpec((Bb, S, D), lambda b: (b, 0, 0)),      # value block
            pl.BlockSpec((Bb, sq_m, S), lambda b: (b, 0, 0)),   # additive mask bias
            pl.BlockSpec((3, D, D), lambda b: (0, 0, 0)),       # W_q|W_k|W_v (resident)
            pl.BlockSpec((3, D), lambda b: (0, 0)),             # b_q|b_k|b_v
            pl.BlockSpec((D, D), lambda b: (0, 0)),             # W_o
            pl.BlockSpec((1, D), lambda b: (0, 0)),             # b_o
        ],
        out_specs=pl.BlockSpec((Bb, S, D), lambda b: (b, 0, 0)),
        compiler_params=pltpu.CompilerParams(dimension_semantics=("parallel",)),
        cost_estimate=pl.CostEstimate(flops=flops, transcendentals=transcendentals,
                                      bytes_accessed=bytes_accessed),
    )(query, key, value, bias, w_qkv, b_qkv, wo, bo)


# ---------------------------------------------------------------------------
# Pure-JAX reference (for correctness check)
# ---------------------------------------------------------------------------
def _ref_mha(query, key, value, mask, params, heads):
    B, S, D = query.shape
    d_k = D // heads

    def lin(x, w, b):
        return x @ w + b

    def split(x):
        return x.reshape(B, S, heads, d_k).transpose(0, 2, 1, 3)

    q = split(lin(query, params["wq"], params["bq"]))
    k = split(lin(key, params["wk"], params["bk"]))
    v = split(lin(value, params["wv"], params["bv"]))
    scores = jnp.einsum("bhqd,bhkd->bhqk", q, k) / math.sqrt(d_k)
    scores = jnp.where(jnp.broadcast_to(mask, scores.shape) == 0, -10000.0, scores)
    w = jax.nn.softmax(scores, axis=-1)
    ctx = jnp.einsum("bhqk,bhkd->bhqd", w, v)
    ctx = ctx.transpose(0, 2, 1, 3).reshape(B, S, D)
    return lin(ctx, params["wo"], params["bo"])


if __name__ == "__main__":
    B, S, D, H = 2, 16, 128, 4  # batch, seq, d_model, heads  (d_k = 32)

    key0 = jax.random.PRNGKey(0)
    ks = jax.random.split(key0, 12)
    scale = 1.0 / math.sqrt(D)
    params = {
        "wq": jax.random.normal(ks[0], (D, D), jnp.float32) * scale,
        "bq": jax.random.normal(ks[1], (D,), jnp.float32) * scale,
        "wk": jax.random.normal(ks[2], (D, D), jnp.float32) * scale,
        "bk": jax.random.normal(ks[3], (D,), jnp.float32) * scale,
        "wv": jax.random.normal(ks[4], (D, D), jnp.float32) * scale,
        "bv": jax.random.normal(ks[5], (D,), jnp.float32) * scale,
        "wo": jax.random.normal(ks[6], (D, D), jnp.float32) * scale,
        "bo": jax.random.normal(ks[7], (D,), jnp.float32) * scale,
    }

    q_in = jax.random.normal(ks[8], (B, S, D), jnp.float32)
    k_in = jax.random.normal(ks[9], (B, S, D), jnp.float32)
    v_in = jax.random.normal(ks[10], (B, S, D), jnp.float32)

    # padding-style mask (B, 1, 1, S): sample 0 attends to all 16 keys, sample 1 to first 10.
    lengths = jnp.array([16, 10])
    mask = (jnp.arange(S)[None, :] < lengths[:, None]).astype(jnp.int32)
    mask = mask[:, None, None, :]  # (B, 1, 1, S)

    out = multi_headed_attention(q_in, k_in, v_in, mask, params, H)
    out = jax.block_until_ready(out)

    ref = _ref_mha(q_in, k_in, v_in, mask, params, H)
    assert out.shape == (B, S, D)
    assert jnp.allclose(out, ref, rtol=1e-2, atol=1e-2), "mismatch vs reference"

    print("KERNEL_OK")
</pallas_src>

<mosaic_0001>
module attributes {stable_mosaic.version = 11 : i64} {
  func.func @kernel(%arg0: i32, %arg1: memref<2x16x128xf32, #tpu.memory_space<vmem>>, %arg2: memref<2x16x128xf32, #tpu.memory_space<vmem>>, %arg3: memref<2x16x128xf32, #tpu.memory_space<vmem>>, %arg4: memref<2x1x16xf32, #tpu.memory_space<vmem>>, %arg5: memref<3x128x128xf32, #tpu.memory_space<vmem>>, %arg6: memref<3x128xf32, #tpu.memory_space<vmem>>, %arg7: memref<128x128xf32, #tpu.memory_space<vmem>>, %arg8: memref<1x128xf32, #tpu.memory_space<vmem>>, %arg9: memref<2x16x128xf32, #tpu.memory_space<vmem>>) attributes {dimension_semantics = [#tpu.dimension_semantics<parallel>], iteration_bounds = array<i64: 1>, scalar_prefetch = 0 : i64, scratch_operands = 0 : i64, tpu.core_type = #tpu.core_type<tc>, window_params = [{transform_indices = @transform_0, window_bounds = array<i64: 2, 16, 128>}, {transform_indices = @transform_1, window_bounds = array<i64: 2, 16, 128>}, {transform_indices = @transform_2, window_bounds = array<i64: 2, 16, 128>}, {transform_indices = @transform_3, window_bounds = array<i64: 2, 1, 16>}, {pipeline_mode = #tpu.pipeline_mode<synchronous>, transform_indices = @transform_4, window_bounds = array<i64: 3, 128, 128>}, {pipeline_mode = #tpu.pipeline_mode<synchronous>, transform_indices = @transform_5, window_bounds = array<i64: 3, 128>}, {pipeline_mode = #tpu.pipeline_mode<synchronous>, transform_indices = @transform_6, window_bounds = array<i64: 128, 128>}, {pipeline_mode = #tpu.pipeline_mode<synchronous>, transform_indices = @transform_7, window_bounds = array<i64: 1, 128>}, {transform_indices = @transform_8, window_bounds = array<i64: 2, 16, 128>}]} {
    %c0 = arith.constant 0 : index
    %c0_0 = arith.constant 0 : index
    %0 = vector.load %arg6[%c0, %c0_0] : memref<3x128xf32, #tpu.memory_space<vmem>>, vector<3x128xf32>
    %c0_1 = arith.constant 0 : index
    %c0_2 = arith.constant 0 : index
    %c0_3 = arith.constant 0 : index
    %1 = vector.load %arg4[%c0_1, %c0_2, %c0_3] : memref<2x1x16xf32, #tpu.memory_space<vmem>>, vector<2x1x16xf32>
    %c0_4 = arith.constant 0 : index
    %c0_5 = arith.constant 0 : index
    %c0_6 = arith.constant 0 : index
    %2 = vector.load %arg1[%c0_4, %c0_5, %c0_6] : memref<2x16x128xf32, #tpu.memory_space<vmem>>, vector<2x16x128xf32>
    %3 = vector.shape_cast %2 : vector<2x16x128xf32> to vector<32x128xf32>
    %c0_7 = arith.constant 0 : index
    %c0_8 = arith.constant 0 : index
    %c0_9 = arith.constant 0 : index
    %4 = vector.load %arg5[%c0_7, %c0_8, %c0_9] : memref<3x128x128xf32, #tpu.memory_space<vmem>>, vector<1x128x128xf32>
    %5 = vector.shape_cast %4 : vector<1x128x128xf32> to vector<128x128xf32>
    %cst = arith.constant dense<0.000000e+00> : vector<32x128xf32>
    %6 = tpu.matmul %3, %5, %cst {dimension_numbers = #tpu.dot_dimension_numbers<[1], [0], [0], [1], [0, 0, 1, 1], [], []>} : vector<32x128xf32>, vector<128x128xf32>, vector<32x128xf32> -> vector<32x128xf32>
    %7 = vector.extract_strided_slice %0 {offsets = [0, 0], sizes = [1, 128], strides = [1, 1]} : vector<3x128xf32> to vector<1x128xf32>
    %8 = vector.broadcast %7 : vector<1x128xf32> to vector<32x128xf32>
    %9 = arith.addf %6, %8 : vector<32x128xf32>
    %10 = vector.shape_cast %9 : vector<32x128xf32> to vector<2x16x128xf32>
    %c0_10 = arith.constant 0 : index
    %c0_11 = arith.constant 0 : index
    %c0_12 = arith.constant 0 : index
    %11 = vector.load %arg2[%c0_10, %c0_11, %c0_12] : memref<2x16x128xf32, #tpu.memory_space<vmem>>, vector<2x16x128xf32>
    %12 = vector.shape_cast %11 : vector<2x16x128xf32> to vector<32x128xf32>
    %c1 = arith.constant 1 : index
    %c0_13 = arith.constant 0 : index
    %c0_14 = arith.constant 0 : index
    %13 = vector.load %arg5[%c1, %c0_13, %c0_14] : memref<3x128x128xf32, #tpu.memory_space<vmem>>, vector<1x128x128xf32>
    %14 = vector.shape_cast %13 : vector<1x128x128xf32> to vector<128x128xf32>
    %cst_15 = arith.constant dense<0.000000e+00> : vector<32x128xf32>
    %15 = tpu.matmul %12, %14, %cst_15 {dimension_numbers = #tpu.dot_dimension_numbers<[1], [0], [0], [1], [0, 0, 1, 1], [], []>} : vector<32x128xf32>, vector<128x128xf32>, vector<32x128xf32> -> vector<32x128xf32>
    %16 = vector.extract_strided_slice %0 {offsets = [1, 0], sizes = [1, 128], strides = [1, 1]} : vector<3x128xf32> to vector<1x128xf32>
    %17 = vector.broadcast %16 : vector<1x128xf32> to vector<32x128xf32>
    %18 = arith.addf %15, %17 : vector<32x128xf32>
    %19 = vector.shape_cast %18 : vector<32x128xf32> to vector<2x16x128xf32>
    %c0_16 = arith.constant 0 : index
    %c0_17 = arith.constant 0 : index
    %c0_18 = arith.constant 0 : index
    %20 = vector.load %arg3[%c0_16, %c0_17, %c0_18] : memref<2x16x128xf32, #tpu.memory_space<vmem>>, vector<2x16x128xf32>
    %21 = vector.shape_cast %20 : vector<2x16x128xf32> to vector<32x128xf32>
    %c2 = arith.constant 2 : index
    %c0_19 = arith.constant 0 : index
    %c0_20 = arith.constant 0 : index
    %22 = vector.load %arg5[%c2, %c0_19, %c0_20] : memref<3x128x128xf32, #tpu.memory_space<vmem>>, vector<1x128x128xf32>
    %23 = vector.shape_cast %22 : vector<1x128x128xf32> to vector<128x128xf32>
    %cst_21 = arith.constant dense<0.000000e+00> : vector<32x128xf32>
    %24 = tpu.matmul %21, %23, %cst_21 {dimension_numbers = #tpu.dot_dimension_numbers<[1], [0], [0], [1], [0, 0, 1, 1], [], []>} : vector<32x128xf32>, vector<128x128xf32>, vector<32x128xf32> -> vector<32x128xf32>
    %25 = vector.extract_strided_slice %0 {offsets = [2, 0], sizes = [1, 128], strides = [1, 1]} : vector<3x128xf32> to vector<1x128xf32>
    %26 = vector.broadcast %25 : vector<1x128xf32> to vector<32x128xf32>
    %27 = arith.addf %24, %26 : vector<32x128xf32>
    %28 = vector.shape_cast %27 : vector<32x128xf32> to vector<2x16x128xf32>
    %29 = vector.extract_strided_slice %10 {offsets = [0, 0, 0], sizes = [2, 16, 32], strides = [1, 1, 1]} : vector<2x16x128xf32> to vector<2x16x32xf32>
    %30 = vector.extract_strided_slice %19 {offsets = [0, 0, 0], sizes = [2, 16, 32], strides = [1, 1, 1]} : vector<2x16x128xf32> to vector<2x16x32xf32>
    %31 = vector.extract_strided_slice %28 {offsets = [0, 0, 0], sizes = [2, 16, 32], strides = [1, 1, 1]} : vector<2x16x128xf32> to vector<2x16x32xf32>
    "tpu.trace_start"() <{level = 10 : i32, message = "bqd,bkd->bqk"}> : () -> ()
    %cst_22 = arith.constant dense<0.000000e+00> : vector<2x16x16xf32>
    %32 = tpu.matmul %29, %30, %cst_22 {dimension_numbers = #tpu.dot_dimension_numbers<[2], [2], [1], [1], [0, 0, 0, 1, 1, 1], [0], [0]>} : vector<2x16x32xf32>, vector<2x16x32xf32>, vector<2x16x16xf32> -> vector<2x16x16xf32>
    "tpu.trace_stop"() : () -> ()
    %cst_23 = arith.constant 0.176776692 : f32
    %33 = vector.broadcast %cst_23 : f32 to vector<2x16x16xf32>
    %34 = arith.mulf %32, %33 : vector<2x16x16xf32>
    %35 = vector.broadcast %1 : vector<2x1x16xf32> to vector<2x16x16xf32>
    %36 = arith.addf %34, %35 : vector<2x16x16xf32>
    %cst_24 = arith.constant dense<0xFF800000> : vector<2x16xf32>
    %37 = vector.multi_reduction <maximumf>, %36, %cst_24 [2] : vector<2x16x16xf32> to vector<2x16xf32>
    %38 = vector.shape_cast %37 : vector<2x16xf32> to vector<2x16x1xf32>
    %39 = vector.broadcast %38 : vector<2x16x1xf32> to vector<2x16x16xf32>
    %40 = arith.subf %36, %39 : vector<2x16x16xf32>
    %41 = math.exp %40 : vector<2x16x16xf32>
    %cst_25 = arith.constant dense<0.000000e+00> : vector<2x16xf32>
    %42 = vector.multi_reduction <add>, %41, %cst_25 [2] : vector<2x16x16xf32> to vector<2x16xf32>
    %43 = vector.shape_cast %42 : vector<2x16xf32> to vector<2x16x1xf32>
    %44 = tpu.reciprocal %43 {approx = true} : vector<2x16x1xf32> -> vector<2x16x1xf32>
    %45 = vector.broadcast %44 : vector<2x16x1xf32> to vector<2x16x16xf32>
    %46 = arith.mulf %41, %45 : vector<2x16x16xf32>
    "tpu.trace_start"() <{level = 10 : i32, message = "bqk,bkd->bqd"}> : () -> ()
    %cst_26 = arith.constant dense<0.000000e+00> : vector<2x16x32xf32>
    %47 = tpu.matmul %46, %31, %cst_26 {dimension_numbers = #tpu.dot_dimension_numbers<[2], [1], [1], [2], [0, 0, 0, 1, 1, 2], [0], [0]>} : vector<2x16x16xf32>, vector<2x16x32xf32>, vector<2x16x32xf32> -> vector<2x16x32xf32>
    "tpu.trace_stop"() : () -> ()
    %48 = vector.extract_strided_slice %10 {offsets = [0, 0, 32], sizes = [2, 16, 32], strides = [1, 1, 1]} : vector<2x16x128xf32> to vector<2x16x32xf32>
    %49 = vector.extract_strided_slice %19 {offsets = [0, 0, 32], sizes = [2, 16, 32], strides = [1, 1, 1]} : vector<2x16x128xf32> to vector<2x16x32xf32>
    %50 = vector.extract_strided_slice %28 {offsets = [0, 0, 32], sizes = [2, 16, 32], strides = [1, 1, 1]} : vector<2x16x128xf32> to vector<2x16x32xf32>
    "tpu.trace_start"() <{level = 10 : i32, message = "bqd,bkd->bqk"}> : () -> ()
    %cst_27 = arith.constant dense<0.000000e+00> : vector<2x16x16xf32>
    %51 = tpu.matmul %48, %49, %cst_27 {dimension_numbers = #tpu.dot_dimension_numbers<[2], [2], [1], [1], [0, 0, 0, 1, 1, 1], [0], [0]>} : vector<2x16x32xf32>, vector<2x16x32xf32>, vector<2x16x16xf32> -> vector<2x16x16xf32>
    "tpu.trace_stop"() : () -> ()
    %cst_28 = arith.constant 0.176776692 : f32
    %52 = vector.broadcast %cst_28 : f32 to vector<2x16x16xf32>
    %53 = arith.mulf %51, %52 : vector<2x16x16xf32>
    %54 = vector.broadcast %1 : vector<2x1x16xf32> to vector<2x16x16xf32>
    %55 = arith.addf %53, %54 : vector<2x16x16xf32>
    %cst_29 = arith.constant dense<0xFF800000> : vector<2x16xf32>
    %56 = vector.multi_reduction <maximumf>, %55, %cst_29 [2] : vector<2x16x16xf32> to vector<2x16xf32>
    %57 = vector.shape_cast %56 : vector<2x16xf32> to vector<2x16x1xf32>
    %58 = vector.broadcast %57 : vector<2x16x1xf32> to vector<2x16x16xf32>
    %59 = arith.subf %55, %58 : vector<2x16x16xf32>
    %60 = math.exp %59 : vector<2x16x16xf32>
    %cst_30 = arith.constant dense<0.000000e+00> : vector<2x16xf32>
    %61 = vector.multi_reduction <add>, %60, %cst_30 [2] : vector<2x16x16xf32> to vector<2x16xf32>
    %62 = vector.shape_cast %61 : vector<2x16xf32> to vector<2x16x1xf32>
    %63 = tpu.reciprocal %62 {approx = true} : vector<2x16x1xf32> -> vector<2x16x1xf32>
    %64 = vector.broadcast %63 : vector<2x16x1xf32> to vector<2x16x16xf32>
    %65 = arith.mulf %60, %64 : vector<2x16x16xf32>
    "tpu.trace_start"() <{level = 10 : i32, message = "bqk,bkd->bqd"}> : () -> ()
    %cst_31 = arith.constant dense<0.000000e+00> : vector<2x16x32xf32>
    %66 = tpu.matmul %65, %50, %cst_31 {dimension_numbers = #tpu.dot_dimension_numbers<[2], [1], [1], [2], [0, 0, 0, 1, 1, 2], [0], [0]>} : vector<2x16x16xf32>, vector<2x16x32xf32>, vector<2x16x32xf32> -> vector<2x16x32xf32>
    "tpu.trace_stop"() : () -> ()
    %67 = vector.extract_strided_slice %10 {offsets = [0, 0, 64], sizes = [2, 16, 32], strides = [1, 1, 1]} : vector<2x16x128xf32> to vector<2x16x32xf32>
    %68 = vector.extract_strided_slice %19 {offsets = [0, 0, 64], sizes = [2, 16, 32], strides = [1, 1, 1]} : vector<2x16x128xf32> to vector<2x16x32xf32>
    %69 = vector.extract_strided_slice %28 {offsets = [0, 0, 64], sizes = [2, 16, 32], strides = [1, 1, 1]} : vector<2x16x128xf32> to vector<2x16x32xf32>
    "tpu.trace_start"() <{level = 10 : i32, message = "bqd,bkd->bqk"}> : () -> ()
    %cst_32 = arith.constant dense<0.000000e+00> : vector<2x16x16xf32>
    %70 = tpu.matmul %67, %68, %cst_32 {dimension_numbers = #tpu.dot_dimension_numbers<[2], [2], [1], [1], [0, 0, 0, 1, 1, 1], [0], [0]>} : vector<2x16x32xf32>, vector<2x16x32xf32>, vector<2x16x16xf32> -> vector<2x16x16xf32>
    "tpu.trace_stop"() : () -> ()
    %cst_33 = arith.constant 0.176776692 : f32
    %71 = vector.broadcast %cst_33 : f32 to vector<2x16x16xf32>
    %72 = arith.mulf %70, %71 : vector<2x16x16xf32>
    %73 = vector.broadcast %1 : vector<2x1x16xf32> to vector<2x16x16xf32>
    %74 = arith.addf %72, %73 : vector<2x16x16xf32>
    %cst_34 = arith.constant dense<0xFF800000> : vector<2x16xf32>
    %75 = vector.multi_reduction <maximumf>, %74, %cst_34 [2] : vector<2x16x16xf32> to vector<2x16xf32>
    %76 = vector.shape_cast %75 : vector<2x16xf32> to vector<2x16x1xf32>
    %77 = vector.broadcast %76 : vector<2x16x1xf32> to vector<2x16x16xf32>
    %78 = arith.subf %74, %77 : vector<2x16x16xf32>
    %79 = math.exp %78 : vector<2x16x16xf32>
    %cst_35 = arith.constant dense<0.000000e+00> : vector<2x16xf32>
    %80 = vector.multi_reduction <add>, %79, %cst_35 [2] : vector<2x16x16xf32> to vector<2x16xf32>
    %81 = vector.shape_cast %80 : vector<2x16xf32> to vector<2x16x1xf32>
    %82 = tpu.reciprocal %81 {approx = true} : vector<2x16x1xf32> -> vector<2x16x1xf32>
    %83 = vector.broadcast %82 : vector<2x16x1xf32> to vector<2x16x16xf32>
    %84 = arith.mulf %79, %83 : vector<2x16x16xf32>
    "tpu.trace_start"() <{level = 10 : i32, message = "bqk,bkd->bqd"}> : () -> ()
    %cst_36 = arith.constant dense<0.000000e+00> : vector<2x16x32xf32>
    %85 = tpu.matmul %84, %69, %cst_36 {dimension_numbers = #tpu.dot_dimension_numbers<[2], [1], [1], [2], [0, 0, 0, 1, 1, 2], [0], [0]>} : vector<2x16x16xf32>, vector<2x16x32xf32>, vector<2x16x32xf32> -> vector<2x16x32xf32>
    "tpu.trace_stop"() : () -> ()
    %86 = vector.extract_strided_slice %10 {offsets = [0, 0, 96], sizes = [2, 16, 32], strides = [1, 1, 1]} : vector<2x16x128xf32> to vector<2x16x32xf32>
    %87 = vector.extract_strided_slice %19 {offsets = [0, 0, 96], sizes = [2, 16, 32], strides = [1, 1, 1]} : vector<2x16x128xf32> to vector<2x16x32xf32>
    %88 = vector.extract_strided_slice %28 {offsets = [0, 0, 96], sizes = [2, 16, 32], strides = [1, 1, 1]} : vector<2x16x128xf32> to vector<2x16x32xf32>
    "tpu.trace_start"() <{level = 10 : i32, message = "bqd,bkd->bqk"}> : () -> ()
    %cst_37 = arith.constant dense<0.000000e+00> : vector<2x16x16xf32>
    %89 = tpu.matmul %86, %87, %cst_37 {dimension_numbers = #tpu.dot_dimension_numbers<[2], [2], [1], [1], [0, 0, 0, 1, 1, 1], [0], [0]>} : vector<2x16x32xf32>, vector<2x16x32xf32>, vector<2x16x16xf32> -> vector<2x16x16xf32>
    "tpu.trace_stop"() : () -> ()
    %cst_38 = arith.constant 0.176776692 : f32
    %90 = vector.broadcast %cst_38 : f32 to vector<2x16x16xf32>
    %91 = arith.mulf %89, %90 : vector<2x16x16xf32>
    %92 = vector.broadcast %1 : vector<2x1x16xf32> to vector<2x16x16xf32>
    %93 = arith.addf %91, %92 : vector<2x16x16xf32>
    %cst_39 = arith.constant dense<0xFF800000> : vector<2x16xf32>
    %94 = vector.multi_reduction <maximumf>, %93, %cst_39 [2] : vector<2x16x16xf32> to vector<2x16xf32>
    %95 = vector.shape_cast %94 : vector<2x16xf32> to vector<2x16x1xf32>
    %96 = vector.broadcast %95 : vector<2x16x1xf32> to vector<2x16x16xf32>
    %97 = arith.subf %93, %96 : vector<2x16x16xf32>
    %98 = math.exp %97 : vector<2x16x16xf32>
    %cst_40 = arith.constant dense<0.000000e+00> : vector<2x16xf32>
    %99 = vector.multi_reduction <add>, %98, %cst_40 [2] : vector<2x16x16xf32> to vector<2x16xf32>
    %100 = vector.shape_cast %99 : vector<2x16xf32> to vector<2x16x1xf32>
    %101 = tpu.reciprocal %100 {approx = true} : vector<2x16x1xf32> -> vector<2x16x1xf32>
    %102 = vector.broadcast %101 : vector<2x16x1xf32> to vector<2x16x16xf32>
    %103 = arith.mulf %98, %102 : vector<2x16x16xf32>
    "tpu.trace_start"() <{level = 10 : i32, message = "bqk,bkd->bqd"}> : () -> ()
    %cst_41 = arith.constant dense<0.000000e+00> : vector<2x16x32xf32>
    %104 = tpu.matmul %103, %88, %cst_41 {dimension_numbers = #tpu.dot_dimension_numbers<[2], [1], [1], [2], [0, 0, 0, 1, 1, 2], [0], [0]>} : vector<2x16x16xf32>, vector<2x16x32xf32>, vector<2x16x32xf32> -> vector<2x16x32xf32>
    "tpu.trace_stop"() : () -> ()
    %105 = tpu.concatenate %47, %66, %85, %104 in 2 : vector<2x16x32xf32>, vector<2x16x32xf32>, vector<2x16x32xf32>, vector<2x16x32xf32> -> vector<2x16x128xf32>
    %106 = vector.shape_cast %105 : vector<2x16x128xf32> to vector<32x128xf32>
    %c0_42 = arith.constant 0 : index
    %c0_43 = arith.constant 0 : index
    %107 = vector.load %arg7[%c0_42, %c0_43] : memref<128x128xf32, #tpu.memory_space<vmem>>, vector<128x128xf32>
    %cst_44 = arith.constant dense<0.000000e+00> : vector<32x128xf32>
    %108 = tpu.matmul %106, %107, %cst_44 {dimension_numbers = #tpu.dot_dimension_numbers<[1], [0], [0], [1], [0, 0, 1, 1], [], []>} : vector<32x128xf32>, vector<128x128xf32>, vector<32x128xf32> -> vector<32x128xf32>
    %c0_45 = arith.constant 0 : index
    %c0_46 = arith.constant 0 : index
    %109 = vector.load %arg8[%c0_45, %c0_46] : memref<1x128xf32, #tpu.memory_space<vmem>>, vector<1x128xf32>
    %110 = vector.broadcast %109 : vector<1x128xf32> to vector<32x128xf32>
    %111 = arith.addf %108, %110 : vector<32x128xf32>
    %112 = vector.shape_cast %111 : vector<32x128xf32> to vector<2x16x128xf32>
    %c0_47 = arith.constant 0 : index
    %c0_48 = arith.constant 0 : index
    %c0_49 = arith.constant 0 : index
    %113 = vector.load %arg9[%c0_47, %c0_48, %c0_49] : memref<2x16x128xf32, #tpu.memory_space<vmem>>, vector<2x16x128xf32>
    tpu.vector_store %arg9[%c0_47, %c0_48, %c0_49], %112 {strides = array<i32>} : memref<2x16x128xf32, #tpu.memory_space<vmem>>, vector<2x16x128xf32>,
    return
  }
  func.func @transform_0(%arg0: i32) -> (i32, i32, i32) {
    %c0_i32 = arith.constant 0 : i32
    %c0_i32_0 = arith.constant 0 : i32
    %c0_i32_1 = arith.constant 0 : i32
    return %arg0, %c0_i32, %c0_i32_0 : i32, i32, i32
  }
  func.func @transform_1(%arg0: i32) -> (i32, i32, i32) {
    %c0_i32 = arith.constant 0 : i32
    %c0_i32_0 = arith.constant 0 : i32
    %c0_i32_1 = arith.constant 0 : i32
    return %arg0, %c0_i32, %c0_i32_0 : i32, i32, i32
  }
  func.func @transform_2(%arg0: i32) -> (i32, i32, i32) {
    %c0_i32 = arith.constant 0 : i32
    %c0_i32_0 = arith.constant 0 : i32
    %c0_i32_1 = arith.constant 0 : i32
    return %arg0, %c0_i32, %c0_i32_0 : i32, i32, i32
  }
  func.func @transform_3(%arg0: i32) -> (i32, i32, i32) {
    %c0_i32 = arith.constant 0 : i32
    %c0_i32_0 = arith.constant 0 : i32
    %c0_i32_1 = arith.constant 0 : i32
    return %arg0, %c0_i32, %c0_i32_0 : i32, i32, i32
  }
  func.func @transform_4(%arg0: i32) -> (i32, i32, i32) {
    %c0_i32 = arith.constant 0 : i32
    %c0_i32_0 = arith.constant 0 : i32
    %c0_i32_1 = arith.constant 0 : i32
    %c0_i32_2 = arith.constant 0 : i32
    return %c0_i32, %c0_i32_0, %c0_i32_1 : i32, i32, i32
  }
  func.func @transform_5(%arg0: i32) -> (i32, i32) {
    %c0_i32 = arith.constant 0 : i32
    %c0_i32_0 = arith.constant 0 : i32
    %c0_i32_1 = arith.constant 0 : i32
    return %c0_i32, %c0_i32_0 : i32, i32
  }
  func.func @transform_6(%arg0: i32) -> (i32, i32) {
    %c0_i32 = arith.constant 0 : i32
    %c0_i32_0 = arith.constant 0 : i32
    %c0_i32_1 = arith.constant 0 : i32
    return %c0_i32, %c0_i32_0 : i32, i32
  }
  func.func @transform_7(%arg0: i32) -> (i32, i32) {
    %c0_i32 = arith.constant 0 : i32
    %c0_i32_0 = arith.constant 0 : i32
    %c0_i32_1 = arith.constant 0 : i32
    return %c0_i32, %c0_i32_0 : i32, i32
  }
  func.func @transform_8(%arg0: i32) -> (i32, i32, i32) {
    %c0_i32 = arith.constant 0 : i32
    %c0_i32_0 = arith.constant 0 : i32
    %c0_i32_1 = arith.constant 0 : i32
    return %arg0, %c0_i32, %c0_i32_0 : i32, i32, i32
  }
}

</mosaic_0001>

<llo_original>
// kernel: tpu_custom_call.1
$region0: #{tpu_custom_call.1}
  #allocation0 [shape = 'u32[]', space=smem, size = 0x4, offset = 0x4, fixed_abs, tag = 'smem constant byte address 0x4 - core index']
  #allocation1 [shape = 'u32[72,128]{1,0:T(1,128)}', space=vmem, size = 0x9000, scoped, tag = 'internal scratch']
  %s0 = inlined_call_operand.hbm [shape: f32[2,16,128], index: 0, kind: input, shape index: {}]
  %s1 = inlined_call_operand.hbm [shape: f32[2,16,128], index: 1, kind: input, shape index: {}]
  %s2 = inlined_call_operand.hbm [shape: f32[2,16,128], index: 2, kind: input, shape index: {}]
  %s3 = inlined_call_operand.hbm [shape: f32[2,1,16], index: 3, kind: input, shape index: {}]
  %s4 = inlined_call_operand.hbm [shape: f32[3,128,128], index: 4, kind: input, shape index: {}]
  %s5 = inlined_call_operand.vmem [shape: f32[3,128], index: 5, kind: input, shape index: {}]
  %s6 = inlined_call_operand.hbm [shape: f32[128,128], index: 6, kind: input, shape index: {}]
  %s7 = inlined_call_operand.vmem [shape: f32[1,128], index: 7, kind: input, shape index: {}]
  %s8 = inlined_call_operand.hbm [shape: f32[2,16,128], index: 8, kind: output, shape index: {}]
  %s9 = sld [smem:[#allocation0]]
  $region66: #{tpu_custom_call.1} parent=0
    _
  %s11 = ssub.s32 1, %s9
  %s12 = scalar_select 0, %s11, %s9
  $region1: #{tpu_custom_call.1} parent=0
    #allocation2 [shape = 'u8[16384]{0}', space=vmem, size = 0x4000, scoped, tag = 'input window, operand 0, single buffered']
    #allocation3 [shape = 's32[1]{0}', space=sflag, size = 0x4, scoped, tag = 'scoped memory for tpu_custom_call.1']
    #allocation4 [shape = 's32[1]{0}', space=sflag, size = 0x4, scoped, tag = 'scoped memory for tpu_custom_call.1']
    #allocation5 [shape = 'u8[16384]{0}', space=vmem, size = 0x4000, scoped, tag = 'input window, operand 1, single buffered']
    #allocation6 [shape = 's32[1]{0}', space=sflag, size = 0x4, scoped, tag = 'scoped memory for tpu_custom_call.1']
    #allocation7 [shape = 'u8[16384]{0}', space=vmem, size = 0x4000, scoped, tag = 'input window, operand 2, single buffered']
    #allocation8 [shape = 'u8[1024]{0}', space=vmem, size = 0x400, scoped, tag = 'input window, operand 3, single buffered']
    #allocation9 [shape = 's32[1]{0}', space=sflag, size = 0x4, scoped, tag = 'scoped memory for tpu_custom_call.1']
    #allocation10 [shape = 'u8[196608]{0}', space=vmem, size = 0x30000, scoped, tag = 'input window, operand 4, single buffered']
    #allocation11 [shape = 'u8[65536]{0}', space=vmem, size = 0x10000, scoped, tag = 'input window, operand 6, single buffered']
    #allocation12 [shape = 's32[1]{0}', space=sflag, size = 0x4, scoped, tag = 'scoped memory for tpu_custom_call.1']
    #allocation13 [shape = 'u8[16384]{0}', space=vmem, size = 0x4000, scoped, tag = 'output window, operand 0, single buffered']
    %13 = vsyncpa [#allocation3], 0
    %14 = vsyncpa [#allocation6], 0
    %15 = vsyncpa [#allocation9], 0
    %16 = vsyncpa [#allocation12], 0
    %17 = vsyncpa [#allocation4], 0
    // Predicated region
    $region2: #{tpu_custom_call.1} parent=1 // pred_check
      _
    $region3: #{tpu_custom_call.1} parent=1 // pred_check_branch
      %19 = sbr.rel (0) target = $region5
    $region4: #{tpu_custom_call.1} parent=1 // pred_region
      %21 = vsyncadd [#allocation3], 0
      %s22 = sshll.u32 %s0, 4
      %s23 = int_to_ptr.hbm [resolvable:$true] %s22
      %s24 = sshll.u32 [#allocation2], 4
      %s25 = int_to_ptr.vmem [resolvable:$true] %s24
      %30 = dma.hbm_to_vmem [thread:$0]  %s23, 512, %s25, [#allocation3], 128, 128, 8
    $region5: #{tpu_custom_call.1} parent=1 // pred_fallthru
      _
    // Predicated region
    $region6: #{tpu_custom_call.1} parent=1 // pred_check
      _
    $region7: #{tpu_custom_call.1} parent=1 // pred_check_branch
      %32 = sbr.rel (0) target = $region9
    $region8: #{tpu_custom_call.1} parent=1 // pred_region
      %34 = vsyncadd [#allocation6], 0
      %s35 = sshll.u32 %s1, 4
      %s36 = int_to_ptr.hbm [resolvable:$true] %s35
      %s37 = sshll.u32 [#allocation5], 4
      %s38 = int_to_ptr.vmem [resolvable:$true] %s37
      %43 = dma.hbm_to_vmem [thread:$0]  %s36, 512, %s38, [#allocation6], 128, 128, 8
    $region9: #{tpu_custom_call.1} parent=1 // pred_fallthru
      _
    // Predicated region
    $region10: #{tpu_custom_call.1} parent=1 // pred_check
      _
    $region11: #{tpu_custom_call.1} parent=1 // pred_check_branch
      %45 = sbr.rel (0) target = $region13
    $region12: #{tpu_custom_call.1} parent=1 // pred_region
      %47 = vsyncadd [#allocation6], 0
      %s48 = sshll.u32 %s2, 4
      %s49 = int_to_ptr.hbm [resolvable:$true] %s48
      %s50 = sshll.u32 [#allocation7], 4
      %s51 = int_to_ptr.vmem [resolvable:$true] %s50
      %56 = dma.hbm_to_vmem [thread:$0]  %s49, 512, %s51, [#allocation6], 128, 128, 8
    $region13: #{tpu_custom_call.1} parent=1 // pred_fallthru
      _
    // Predicated region
    $region14: #{tpu_custom_call.1} parent=1 // pred_check
      _
    $region15: #{tpu_custom_call.1} parent=1 // pred_check_branch
      %58 = sbr.rel (0) target = $region17
    $region16: #{tpu_custom_call.1} parent=1 // pred_region
      %60 = vsyncadd [#allocation9], 0
      %s61 = sshll.u32 %s3, 4
      %s62 = int_to_ptr.hbm [resolvable:$true] %s61
      %s63 = sshll.u32 [#allocation8], 4
      %s64 = int_to_ptr.vmem [resolvable:$true] %s63
      %69 = dma.hbm_to_vmem [thread:$0]  %s62, 32, %s64, [#allocation9], 16, 16, 1
    $region17: #{tpu_custom_call.1} parent=1 // pred_fallthru
      _
    // Predicated region
    $region18: #{tpu_custom_call.1} parent=1 // pred_check
      _
    $region19: #{tpu_custom_call.1} parent=1 // pred_check_branch
      %71 = sbr.rel (0) target = $region21
    $region20: #{tpu_custom_call.1} parent=1 // pred_region
      %73 = vsyncadd [#allocation9], 0
      %s74 = sshll.u32 %s4, 4
      %s75 = int_to_ptr.hbm [resolvable:$true] %s74
      %s76 = sshll.u32 [#allocation10], 4
      %s77 = int_to_ptr.vmem [resolvable:$true] %s76
      %82 = dma.hbm_to_vmem [thread:$0]  %s75, 6144, %s77, [#allocation9], 128, 128, 8
    $region21: #{tpu_custom_call.1} parent=1 // pred_fallthru
      _
    // Predicated region
    $region22: #{tpu_custom_call.1} parent=1 // pred_check
      _
    $region23: #{tpu_custom_call.1} parent=1 // pred_check_branch
      %84 = sbr.rel (0) target = $region25
    $region24: #{tpu_custom_call.1} parent=1 // pred_region
      _
    $region25: #{tpu_custom_call.1} parent=1 // pred_fallthru
      _
    // Predicated region
    $region26: #{tpu_custom_call.1} parent=1 // pred_check
      _
    $region27: #{tpu_custom_call.1} parent=1 // pred_check_branch
      %86 = sbr.rel (0) target = $region29
    $region28: #{tpu_custom_call.1} parent=1 // pred_region
      %88 = vsyncadd [#allocation12], 0
      %s89 = sshll.u32 %s6, 4
      %s90 = int_to_ptr.hbm [resolvable:$true] %s89
      %s91 = sshll.u32 [#allocation11], 4
      %s92 = int_to_ptr.vmem [resolvable:$true] %s91
      %97 = dma.hbm_to_vmem [thread:$0]  %s90, 2048, %s92, [#allocation12], 128, 128, 8
    $region29: #{tpu_custom_call.1} parent=1 // pred_fallthru
      _
    // Predicated region
    $region30: #{tpu_custom_call.1} parent=1 // pred_check
      _
    $region31: #{tpu_custom_call.1} parent=1 // pred_check_branch
      %99 = sbr.rel (0) target = $region33
    $region32: #{tpu_custom_call.1} parent=1 // pred_region
      _
    $region33: #{tpu_custom_call.1} parent=1 // pred_fallthru
      _
    // Predicated region
    $region34: #{tpu_custom_call.1} parent=1 // pred_check
      _
    $region35: #{tpu_custom_call.1} parent=1 // pred_check_branch
      %101 = sbr.rel (0) target = $region37
    $region36: #{tpu_custom_call.1} parent=1 // pred_region
      %103 = dma.done [#allocation3], 512
    $region37: #{tpu_custom_call.1} parent=1 // pred_fallthru
      _
    // Predicated region
    $region38: #{tpu_custom_call.1} parent=1 // pred_check
      _
    $region39: #{tpu_custom_call.1} parent=1 // pred_check_branch
      %105 = sbr.rel (0) target = $region41
    $region40: #{tpu_custom_call.1} parent=1 // pred_region
      %107 = dma.done [#allocation6], 512
    $region41: #{tpu_custom_call.1} parent=1 // pred_fallthru
      _
    // Predicated region
    $region42: #{tpu_custom_call.1} parent=1 // pred_check
      _
    $region43: #{tpu_custom_call.1} parent=1 // pred_check_branch
      %109 = sbr.rel (0) target = $region45
    $region44: #{tpu_custom_call.1} parent=1 // pred_region
      %111 = dma.done [#allocation6], 512
    $region45: #{tpu_custom_call.1} parent=1 // pred_fallthru
      _
    // Predicated region
    $region46: #{tpu_custom_call.1} parent=1 // pred_check
      _
    $region47: #{tpu_custom_call.1} parent=1 // pred_check_branch
      %113 = sbr.rel (0) target = $region49
    $region48: #{tpu_custom_call.1} parent=1 // pred_region
      %115 = dma.done [#allocation9], 32
    $region49: #{tpu_custom_call.1} parent=1 // pred_fallthru
      _
    // Predicated region
    $region50: #{tpu_custom_call.1} parent=1 // pred_check
      _
    $region51: #{tpu_custom_call.1} parent=1 // pred_check_branch
      %117 = sbr.rel (0) target = $region53
    $region52: #{tpu_custom_call.1} parent=1 // pred_region
      %119 = dma.done [#allocation9], 6144
    $region53: #{tpu_custom_call.1} parent=1 // pred_fallthru
      _
    // Predicated region
    $region54: #{tpu_custom_call.1} parent=1 // pred_check
      _
    $region55: #{tpu_custom_call.1} parent=1 // pred_check_branch
      %121 = sbr.rel (0) target = $region57
    $region56: #{tpu_custom_call.1} parent=1 // pred_region
      %123 = dma.done [#allocation12], 2048
    $region57: #{tpu_custom_call.1} parent=1 // pred_fallthru
      _
    %v124 = vld [vmem:[%s5] sm:$0x7]
    %v125 = vld [vmem:[#allocation8] sm:$0x1]
    %v126 = vld [vmem:[#allocation8 + $0x1] sm:$0x1]
    %v127 = vld [vmem:[#allocation2] sm:$0xff]
    %v128 = vld [vmem:[#allocation2 + $0x8] sm:$0xff]
    %v129 = vld [vmem:[#allocation2 + $0x10] sm:$0xff]
    %v130 = vld [vmem:[#allocation2 + $0x18] sm:$0xff]
    %v131 = vld [vmem:[#allocation10] sm:$0xff]
    %v132 = vld [vmem:[#allocation10 + $0x8] sm:$0xff]
    %v133 = vld [vmem:[#allocation10 + $0x10] sm:$0xff]
    %v134 = vld [vmem:[#allocation10 + $0x18] sm:$0xff]
    %v135 = vld [vmem:[#allocation10 + $0x20] sm:$0xff]
    %v136 = vld [vmem:[#allocation10 + $0x28] sm:$0xff]
    %v137 = vld [vmem:[#allocation10 + $0x30] sm:$0xff]
    %v138 = vld [vmem:[#allocation10 + $0x38] sm:$0xff]
    %v139 = vld [vmem:[#allocation10 + $0x40] sm:$0xff]
    %v140 = vld [vmem:[#allocation10 + $0x48] sm:$0xff]
    %v141 = vld [vmem:[#allocation10 + $0x50] sm:$0xff]
    %v142 = vld [vmem:[#allocation10 + $0x58] sm:$0xff]
    %v143 = vld [vmem:[#allocation10 + $0x60] sm:$0xff]
    %v144 = vld [vmem:[#allocation10 + $0x68] sm:$0xff]
    %v145 = vld [vmem:[#allocation10 + $0x70] sm:$0xff]
    %v146 = vld [vmem:[#allocation10 + $0x78] sm:$0xff]
    %v147 = vperm.slane %v124, 0
    %148 = vmatpush.msra.mxu0 %v146
    %149 = vmatpush.msra.mxu0 %v145
    %150 = vmatpush.msra.mxu0 %v144
    %151 = vmatpush.msra.mxu0 %v143
    %152 = vmatpush.msra.mxu0 %v142
    %153 = vmatpush.msra.mxu0 %v141
    %154 = vmatpush.msra.mxu0 %v140
    %155 = vmatpush.msra.mxu0 %v139
    %156 = vmatpush.msra.mxu0 %v138
    %157 = vmatpush.msra.mxu0 %v137
    %158 = vmatpush.msra.mxu0 %v136
    %159 = vmatpush.msra.mxu0 %v135
    %160 = vmatpush.msra.mxu0 %v134
    %161 = vmatpush.msra.mxu0 %v133
    %162 = vmatpush.msra.mxu0 %v132
    %163 = vmatpush.msra.mxu0 %v131
    %164 = vmatmul.f32.gmra.mxu0 %v127
    %v165 = vpop.f32.mrf.mxu0
    %v166 = vadd.f32 %v147, %v165
    %167 = vmatmul.f32.gmra.mxu0 %v128
    %v168 = vpop.f32.mrf.mxu0
    %v169 = vadd.f32 %v147, %v168
    %170 = vmatmul.f32.gmra.mxu0 %v129
    %v171 = vpop.f32.mrf.mxu0
    %v172 = vadd.f32 %v147, %v171
    %173 = vmatmul.f32.gmra.mxu0 %v130
    %v174 = vpop.f32.mrf.mxu0
    %v175 = vadd.f32 %v147, %v174
    %176 = vdwg.mxu0
    %v177 = vld [vmem:[#allocation5] sm:$0xff]
    %v178 = vld [vmem:[#allocation5 + $0x8] sm:$0xff]
    %v179 = vld [vmem:[#allocation5 + $0x10] sm:$0xff]
    %v180 = vld [vmem:[#allocation5 + $0x18] sm:$0xff]
    %s181 = scalar_lea.vmem [#allocation10], 128
    %v182 = vld [vmem:[%s181] sm:$0xff]
    %v183 = vld [vmem:[%s181 + $0x8] sm:$0xff]
    %v184 = vld [vmem:[%s181 + $0x10] sm:$0xff]
    %v185 = vld [vmem:[%s181 + $0x18] sm:$0xff]
    %v186 = vld [vmem:[%s181 + $0x20] sm:$0xff]
    %v187 = vld [vmem:[%s181 + $0x28] sm:$0xff]
    %v188 = vld [vmem:[%s181 + $0x30] sm:$0xff]
    %v189 = vld [vmem:[%s181 + $0x38] sm:$0xff]
    %v190 = vld [vmem:[%s181 + $0x40] sm:$0xff]
    %v191 = vld [vmem:[%s181 + $0x48] sm:$0xff]
    %v192 = vld [vmem:[%s181 + $0x50] sm:$0xff]
    %v193 = vld [vmem:[%s181 + $0x58] sm:$0xff]
    %v194 = vld [vmem:[%s181 + $0x60] sm:$0xff]
    %v195 = vld [vmem:[%s181 + $0x68] sm:$0xff]
    %v196 = vld [vmem:[%s181 + $0x70] sm:$0xff]
    %v197 = vld [vmem:[%s181 + $0x78] sm:$0xff]
    %v198 = vperm.slane %v124, 1
    %199 = vmatpush.msra.mxu0 %v197
    %200 = vmatpush.msra.mxu0 %v196
    %201 = vmatpush.msra.mxu0 %v195
    %202 = vmatpush.msra.mxu0 %v194
    %203 = vmatpush.msra.mxu0 %v193
    %204 = vmatpush.msra.mxu0 %v192
    %205 = vmatpush.msra.mxu0 %v191
    %206 = vmatpush.msra.mxu0 %v190
    %207 = vmatpush.msra.mxu0 %v189
    %208 = vmatpush.msra.mxu0 %v188
    %209 = vmatpush.msra.mxu0 %v187
    %210 = vmatpush.msra.mxu0 %v186
    %211 = vmatpush.msra.mxu0 %v185
    %212 = vmatpush.msra.mxu0 %v184
    %213 = vmatpush.msra.mxu0 %v183
    %214 = vmatpush.msra.mxu0 %v182
    %215 = vmatmul.f32.gmra.mxu0 %v177
    %v216 = vpop.f32.mrf.mxu0
    %v217 = vadd.f32 %v198, %v216
    %218 = vmatmul.f32.gmra.mxu0 %v178
    %v219 = vpop.f32.mrf.mxu0
    %v220 = vadd.f32 %v198, %v219
    %221 = vmatmul.f32.gmra.mxu0 %v179
    %v222 = vpop.f32.mrf.mxu0
    %v223 = vadd.f32 %v198, %v222
    %224 = vmatmul.f32.gmra.mxu0 %v180
    %v225 = vpop.f32.mrf.mxu0
    %v226 = vadd.f32 %v198, %v225
    %227 = vdwg.mxu0
    %v228 = vld [vmem:[#allocation7] sm:$0xff]
    %v229 = vld [vmem:[#allocation7 + $0x8] sm:$0xff]
    %v230 = vld [vmem:[#allocation7 + $0x10] sm:$0xff]
    %v231 = vld [vmem:[#allocation7 + $0x18] sm:$0xff]
    %s232 = scalar_lea.vmem [#allocation10], 256
    %v233 = vld [vmem:[%s232] sm:$0xff]
    %v234 = vld [vmem:[%s232 + $0x8] sm:$0xff]
    %v235 = vld [vmem:[%s232 + $0x10] sm:$0xff]
    %v236 = vld [vmem:[%s232 + $0x18] sm:$0xff]
    %v237 = vld [vmem:[%s232 + $0x20] sm:$0xff]
    %v238 = vld [vmem:[%s232 + $0x28] sm:$0xff]
    %v239 = vld [vmem:[%s232 + $0x30] sm:$0xff]
    %v240 = vld [vmem:[%s232 + $0x38] sm:$0xff]
    %v241 = vld [vmem:[%s232 + $0x40] sm:$0xff]
    %v242 = vld [vmem:[%s232 + $0x48] sm:$0xff]
    %v243 = vld [vmem:[%s232 + $0x50] sm:$0xff]
    %v244 = vld [vmem:[%s232 + $0x58] sm:$0xff]
    %v245 = vld [vmem:[%s232 + $0x60] sm:$0xff]
    %v246 = vld [vmem:[%s232 + $0x68] sm:$0xff]
    %v247 = vld [vmem:[%s232 + $0x70] sm:$0xff]
    %v248 = vld [vmem:[%s232 + $0x78] sm:$0xff]
    %v249 = vperm.slane %v124, 2
    %250 = vmatpush.msra.mxu0 %v248
    %251 = vmatpush.msra.mxu0 %v247
    %252 = vmatpush.msra.mxu0 %v246
    %253 = vmatpush.msra.mxu0 %v245
    %254 = vmatpush.msra.mxu0 %v244
    %255 = vmatpush.msra.mxu0 %v243
    %256 = vmatpush.msra.mxu0 %v242
    %257 = vmatpush.msra.mxu0 %v241
    %258 = vmatpush.msra.mxu0 %v240
    %259 = vmatpush.msra.mxu0 %v239
    %260 = vmatpush.msra.mxu0 %v238
    %261 = vmatpush.msra.mxu0 %v237
    %262 = vmatpush.msra.mxu0 %v236
    %263 = vmatpush.msra.mxu0 %v235
    %264 = vmatpush.msra.mxu0 %v234
    %265 = vmatpush.msra.mxu0 %v233
    %266 = vmatmul.f32.gmra.mxu0 %v228
    %v267 = vpop.f32.mrf.mxu0
    %v268 = vadd.f32 %v249, %v267
    %269 = vmatmul.f32.gmra.mxu0 %v229
    %v270 = vpop.f32.mrf.mxu0
    %v271 = vadd.f32 %v249, %v270
    %272 = vmatmul.f32.gmra.mxu0 %v230
    %v273 = vpop.f32.mrf.mxu0
    %v274 = vadd.f32 %v249, %v273
    %275 = vmatmul.f32.gmra.mxu0 %v231
    %v276 = vpop.f32.mrf.mxu0
    %v277 = vadd.f32 %v249, %v276
    %278 = vdwg.mxu0
    %vm279 = vcmask 261120
    %v281 = vsel %vm279, %v166, 0
    %v284 = vsel %vm279, %v169, 0
    %v287 = vsel %vm279, %v217, 0
    %v290 = vsel %vm279, %v220, 0
    %292 = vmatpush.xpose.msra.mxu0 0.0
    %293 = vmatpush.xpose.msra.mxu0 0.0
    %294 = vmatpush.xpose.msra.mxu0 0.0
    %295 = vmatpush.xpose.msra.mxu0 0.0
    %296 = vmatpush.xpose.msra.mxu0 0.0
    %297 = vmatpush.xpose.msra.mxu0 0.0
    %298 = vmatpush.xpose.msra.mxu0 0.0
    %299 = vmatpush.xpose.msra.mxu0 0.0
    %300 = vmatpush.xpose.msra.mxu0 0.0
    %301 = vmatpush.xpose.msra.mxu0 0.0
    %302 = vmatpush.xpose.msra.mxu0 0.0
    %303 = vmatpush.xpose.msra.mxu0 0.0
    %304 = vmatpush.xpose.msra.mxu0 0.0
    %305 = vmatpush.xpose.msra.mxu0 0.0
    %306 = vmatpush.xpose.msra.mxu0 %v290
    %307 = vmatpush.xpose.msra.mxu0 %v287
    %308 = vmatmul.f32.gmra.mxu0 %v281
    %v309 = vpop.f32.mrf.mxu0
    %v310 = vadd.f32 0.0, %v309
    %311 = vmatmul.f32.gmra.mxu0 %v284
    %v312 = vpop.f32.mrf.mxu0
    %v313 = vadd.f32 0.0, %v312
    %314 = vdwg.mxu0
    %v316 = vsel %vm279, %v172, 0
    %v319 = vsel %vm279, %v175, 0
    %v322 = vsel %vm279, %v223, 0
    %v325 = vsel %vm279, %v226, 0
    %327 = vmatpush.xpose.msra.mxu0 0.0
    %328 = vmatpush.xpose.msra.mxu0 0.0
    %329 = vmatpush.xpose.msra.mxu0 0.0
    %330 = vmatpush.xpose.msra.mxu0 0.0
    %331 = vmatpush.xpose.msra.mxu0 0.0
    %332 = vmatpush.xpose.msra.mxu0 0.0
    %333 = vmatpush.xpose.msra.mxu0 0.0
    %334 = vmatpush.xpose.msra.mxu0 0.0
    %335 = vmatpush.xpose.msra.mxu0 0.0
    %336 = vmatpush.xpose.msra.mxu0 0.0
    %337 = vmatpush.xpose.msra.mxu0 0.0
    %338 = vmatpush.xpose.msra.mxu0 0.0
    %339 = vmatpush.xpose.msra.mxu0 0.0
    %340 = vmatpush.xpose.msra.mxu0 0.0
    %341 = vmatpush.xpose.msra.mxu0 %v325
    %342 = vmatpush.xpose.msra.mxu0 %v322
    %343 = vmatmul.f32.gmra.mxu0 %v316
    %v344 = vpop.f32.mrf.mxu0
    %v345 = vadd.f32 0.0, %v344
    %346 = vmatmul.f32.gmra.mxu0 %v319
    %v347 = vpop.f32.mrf.mxu0
    %v348 = vadd.f32 0.0, %v347
    %349 = vdwg.mxu0
    %v350 = vmul.f32 %v310, 0.17677669
    %v351 = vmul.f32 %v313, 0.17677669
    %v352 = vmul.f32 %v345, 0.17677669
    %v353 = vmul.f32 %v348, 0.17677669
    %v356 = vperm.slane %v125, 0
    %v357 = vperm.slane %v126, 0
    %v360 = vadd.f32 %v350, %v356
    %v361 = vadd.f32 %v351, %v356
    %v362 = vadd.f32 %v352, %v357
    %v363 = vadd.f32 %v353, %v357
    %vm364 = vcmask 130048
    %v365 = vsel %vm364, %v360, -inf
    %366 = vmax.xlane.f32.xlu0 %v365
    %v367 = vpop.xlane.xlu0 %366
    %v368 = vsel %vm364, %v361, -inf
    %369 = vmax.xlane.f32.xlu0 %v368
    %v370 = vpop.xlane.xlu0 %369
    %v371 = vsel %vm364, %v362, -inf
    %372 = vmax.xlane.f32.xlu0 %v371
    %v373 = vpop.xlane.xlu0 %372
    %v374 = vsel %vm364, %v363, -inf
    %375 = vmax.xlane.f32.xlu0 %v374
    %v376 = vpop.xlane.xlu0 %375
    %v377 = vsub.f32 %v360, %v367
    %v378 = vsub.f32 %v361, %v370
    %v379 = vsub.f32 %v362, %v373
    %v380 = vsub.f32 %v363, %v376
    %v381 = vmul.f32 %v377, 1.442695
    %v382 = vpow.pop %v381
    %v383 = vmul.f32 %v378, 1.442695
    %v384 = vpow.pop %v383
    %v385 = vmul.f32 %v379, 1.442695
    %v386 = vpow.pop %v385
    %v387 = vmul.f32 %v380, 1.442695
    %v388 = vpow.pop %v387
    %v389 = vsel %vm364, %v382, 0.0
    %390 = vadd.xlane.f32.xlu0 %v389
    %v391 = vpop.xlane.xlu0 %390
    %v392 = vsel %vm364, %v384, 0.0
    %393 = vadd.xlane.f32.xlu0 %v392
    %v394 = vpop.xlane.xlu0 %393
    %v395 = vsel %vm364, %v386, 0.0
    %396 = vadd.xlane.f32.xlu0 %v395
    %v397 = vpop.xlane.xlu0 %396
    %v398 = vsel %vm364, %v388, 0.0
    %399 = vadd.xlane.f32.xlu0 %v398
    %v400 = vpop.xlane.xlu0 %399
    %v401 = vrcp.pop %v391
    %v402 = vrcp.pop %v394
    %v403 = vrcp.pop %v397
    %v404 = vrcp.pop %v400
    %v405 = vmul.f32 %v382, %v401
    %v406 = vmul.f32 %v384, %v402
    %v407 = vmul.f32 %v386, %v403
    %v408 = vmul.f32 %v388, %v404
    %v410 = vsel %vm364, %v405, 0
    %v413 = vsel %vm364, %v406, 0
    %415 = vmatpush.msra.mxu0 0.0
    %416 = vmatpush.msra.mxu0 0.0
    %417 = vmatpush.msra.mxu0 0.0
    %418 = vmatpush.msra.mxu0 0.0
    %419 = vmatpush.msra.mxu0 0.0
    %420 = vmatpush.msra.mxu0 0.0
    %421 = vmatpush.msra.mxu0 0.0
    %422 = vmatpush.msra.mxu0 0.0
    %423 = vmatpush.msra.mxu0 0.0
    %424 = vmatpush.msra.mxu0 0.0
    %425 = vmatpush.msra.mxu0 0.0
    %426 = vmatpush.msra.mxu0 0.0
    %427 = vmatpush.msra.mxu0 0.0
    %428 = vmatpush.msra.mxu0 0.0
    %429 = vmatpush.msra.mxu0 %v271
    %430 = vmatpush.msra.mxu0 %v268
    %431 = vmatmul.f32.gmra.mxu0 %v410
    %v432 = vpop.f32.mrf.mxu0
    %v433 = vadd.f32 0.0, %v432
    %434 = vmatmul.f32.gmra.mxu0 %v413
    %v435 = vpop.f32.mrf.mxu0
    %v436 = vadd.f32 0.0, %v435
    %437 = vdwg.mxu0
    %v439 = vsel %vm364, %v407, 0
    %v442 = vsel %vm364, %v408, 0
    %444 = vmatpush.msra.mxu0 0.0
    %445 = vmatpush.msra.mxu0 0.0
    %446 = vmatpush.msra.mxu0 0.0
    %447 = vmatpush.msra.mxu0 0.0
    %448 = vmatpush.msra.mxu0 0.0
    %449 = vmatpush.msra.mxu0 0.0
    %450 = vmatpush.msra.mxu0 0.0
    %451 = vmatpush.msra.mxu0 0.0
    %452 = vmatpush.msra.mxu0 0.0
    %453 = vmatpush.msra.mxu0 0.0
    %454 = vmatpush.msra.mxu0 0.0
    %455 = vmatpush.msra.mxu0 0.0
    %456 = vmatpush.msra.mxu0 0.0
    %457 = vmatpush.msra.mxu0 0.0
    %458 = vmatpush.msra.mxu0 %v277
    %459 = vmatpush.msra.mxu0 %v274
    %460 = vmatmul.f32.gmra.mxu0 %v439
    %v461 = vpop.f32.mrf.mxu0
    %v462 = vadd.f32 0.0, %v461
    %463 = vmatmul.f32.gmra.mxu0 %v442
    %v464 = vpop.f32.mrf.mxu0
    %v465 = vadd.f32 0.0, %v464
    %466 = vdwg.mxu0
    %467 = vrot.lane.b32.xlu0 %v166, 96
    %v468 = vpop.permute.xlu0 %467
    %469 = vrot.lane.b32.xlu0 %v169, 96
    %v470 = vpop.permute.xlu0 %469
    %471 = vrot.lane.b32.xlu0 %v217, 96
    %v472 = vpop.permute.xlu0 %471
    %473 = vrot.lane.b32.xlu0 %v220, 96
    %v474 = vpop.permute.xlu0 %473
    %v475 = vsel %vm279, %v468, 0
    %v477 = vsel %vm279, %v470, 0
    %v479 = vsel %vm279, %v472, 0
    %v481 = vsel %vm279, %v474, 0
    %483 = vmatpush.xpose.msra.mxu0 0.0
    %484 = vmatpush.xpose.msra.mxu0 0.0
    %485 = vmatpush.xpose.msra.mxu0 0.0
    %486 = vmatpush.xpose.msra.mxu0 0.0
    %487 = vmatpush.xpose.msra.mxu0 0.0
    %488 = vmatpush.xpose.msra.mxu0 0.0
    %489 = vmatpush.xpose.msra.mxu0 0.0
    %490 = vmatpush.xpose.msra.mxu0 0.0
    %491 = vmatpush.xpose.msra.mxu0 0.0
    %492 = vmatpush.xpose.msra.mxu0 0.0
    %493 = vmatpush.xpose.msra.mxu0 0.0
    %494 = vmatpush.xpose.msra.mxu0 0.0
    %495 = vmatpush.xpose.msra.mxu0 0.0
    %496 = vmatpush.xpose.msra.mxu0 0.0
    %497 = vmatpush.xpose.msra.mxu0 %v481
    %498 = vmatpush.xpose.msra.mxu0 %v479
    %499 = vmatmul.f32.gmra.mxu0 %v475
    %v500 = vpop.f32.mrf.mxu0
    %v501 = vadd.f32 0.0, %v500
    %502 = vmatmul.f32.gmra.mxu0 %v477
    %v503 = vpop.f32.mrf.mxu0
    %v504 = vadd.f32 0.0, %v503
    %505 = vdwg.mxu0
    %506 = vrot.lane.b32.xlu0 %v172, 96
    %v507 = vpop.permute.xlu0 %506
    %508 = vrot.lane.b32.xlu0 %v175, 96
    %v509 = vpop.permute.xlu0 %508
    %510 = vrot.lane.b32.xlu0 %v223, 96
    %v511 = vpop.permute.xlu0 %510
    %512 = vrot.lane.b32.xlu0 %v226, 96
    %v513 = vpop.permute.xlu0 %512
    %v514 = vsel %vm279, %v507, 0
    %v516 = vsel %vm279, %v509, 0
    %v518 = vsel %vm279, %v511, 0
    %v520 = vsel %vm279, %v513, 0
    %522 = vmatpush.xpose.msra.mxu0 0.0
    %523 = vmatpush.xpose.msra.mxu0 0.0
    %524 = vmatpush.xpose.msra.mxu0 0.0
    %525 = vmatpush.xpose.msra.mxu0 0.0
    %526 = vmatpush.xpose.msra.mxu0 0.0
    %527 = vmatpush.xpose.msra.mxu0 0.0
    %528 = vmatpush.xpose.msra.mxu0 0.0
    %529 = vmatpush.xpose.msra.mxu0 0.0
    %530 = vmatpush.xpose.msra.mxu0 0.0
    %531 = vmatpush.xpose.msra.mxu0 0.0
    %532 = vmatpush.xpose.msra.mxu0 0.0
    %533 = vmatpush.xpose.msra.mxu0 0.0
    %534 = vmatpush.xpose.msra.mxu0 0.0
    %535 = vmatpush.xpose.msra.mxu0 0.0
    %536 = vmatpush.xpose.msra.mxu0 %v520
    %537 = vmatpush.xpose.msra.mxu0 %v518
    %538 = vmatmul.f32.gmra.mxu0 %v514
    %v539 = vpop.f32.mrf.mxu0
    %v540 = vadd.f32 0.0, %v539
    %541 = vmatmul.f32.gmra.mxu0 %v516
    %v542 = vpop.f32.mrf.mxu0
    %v543 = vadd.f32 0.0, %v542
    %544 = vdwg.mxu0
    %v545 = vmul.f32 %v501, 0.17677669
    %v546 = vmul.f32 %v504, 0.17677669
    %v547 = vmul.f32 %v540, 0.17677669
    %v548 = vmul.f32 %v543, 0.17677669
    %v549 = vadd.f32 %v545, %v356
    %v550 = vadd.f32 %v546, %v356
    %v551 = vadd.f32 %v547, %v357
    %v552 = vadd.f32 %v548, %v357
    %v553 = vsel %vm364, %v549, -inf
    %554 = vmax.xlane.f32.xlu0 %v553
    %v555 = vpop.xlane.xlu0 %554
    %v556 = vsel %vm364, %v550, -inf
    %557 = vmax.xlane.f32.xlu0 %v556
    %v558 = vpop.xlane.xlu0 %557
    %v559 = vsel %vm364, %v551, -inf
    %560 = vmax.xlane.f32.xlu0 %v559
    %v561 = vpop.xlane.xlu0 %560
    %v562 = vsel %vm364, %v552, -inf
    %563 = vmax.xlane.f32.xlu0 %v562
    %v564 = vpop.xlane.xlu0 %563
    %v565 = vsub.f32 %v549, %v555
    %v566 = vsub.f32 %v550, %v558
    %v567 = vsub.f32 %v551, %v561
    %v568 = vsub.f32 %v552, %v564
    %v569 = vmul.f32 %v565, 1.442695
    %v570 = vpow.pop %v569
    %v571 = vmul.f32 %v566, 1.442695
    %v572 = vpow.pop %v571
    %v573 = vmul.f32 %v567, 1.442695
    %v574 = vpow.pop %v573
    %v575 = vmul.f32 %v568, 1.442695
    %v576 = vpow.pop %v575
    %v577 = vsel %vm364, %v570, 0.0
    %578 = vadd.xlane.f32.xlu0 %v577
    %v579 = vpop.xlane.xlu0 %578
    %v580 = vsel %vm364, %v572, 0.0
    %581 = vadd.xlane.f32.xlu0 %v580
    %v582 = vpop.xlane.xlu0 %581
    %v583 = vsel %vm364, %v574, 0.0
    %584 = vadd.xlane.f32.xlu0 %v583
    %v585 = vpop.xlane.xlu0 %584
    %v586 = vsel %vm364, %v576, 0.0
    %587 = vadd.xlane.f32.xlu0 %v586
    %v588 = vpop.xlane.xlu0 %587
    %v589 = vrcp.pop %v579
    %v590 = vrcp.pop %v582
    %v591 = vrcp.pop %v585
    %v592 = vrcp.pop %v588
    %v593 = vmul.f32 %v570, %v589
    %v594 = vmul.f32 %v572, %v590
    %v595 = vmul.f32 %v574, %v591
    %v596 = vmul.f32 %v576, %v592
    %599 = vrot.lane.b32.xlu0 %v268, 96
    %v600 = vpop.permute.xlu0 %599
    %601 = vrot.lane.b32.xlu0 %v271, 96
    %v602 = vpop.permute.xlu0 %601
    %v606 = vsel %vm364, %v593, 0
    %v609 = vsel %vm364, %v594, 0
    %611 = vmatpush.msra.mxu0 0.0
    %612 = vmatpush.msra.mxu0 0.0
    %613 = vmatpush.msra.mxu0 0.0
    %614 = vmatpush.msra.mxu0 0.0
    %615 = vmatpush.msra.mxu0 0.0
    %616 = vmatpush.msra.mxu0 0.0
    %617 = vmatpush.msra.mxu0 0.0
    %618 = vmatpush.msra.mxu0 0.0
    %619 = vmatpush.msra.mxu0 0.0
    %620 = vmatpush.msra.mxu0 0.0
    %621 = vmatpush.msra.mxu0 0.0
    %622 = vmatpush.msra.mxu0 0.0
    %623 = vmatpush.msra.mxu0 0.0
    %624 = vmatpush.msra.mxu0 0.0
    %625 = vmatpush.msra.mxu0 %v602
    %626 = vmatpush.msra.mxu0 %v600
    %627 = vmatmul.f32.gmra.mxu0 %v606
    %v628 = vpop.f32.mrf.mxu0
    %v629 = vadd.f32 0.0, %v628
    %630 = vmatmul.f32.gmra.mxu0 %v609
    %v631 = vpop.f32.mrf.mxu0
    %v632 = vadd.f32 0.0, %v631
    %633 = vdwg.mxu0
    %636 = vrot.lane.b32.xlu0 %v274, 96
    %v637 = vpop.permute.xlu0 %636
    %638 = vrot.lane.b32.xlu0 %v277, 96
    %v639 = vpop.permute.xlu0 %638
    %v643 = vsel %vm364, %v595, 0
    %v646 = vsel %vm364, %v596, 0
    %648 = vmatpush.msra.mxu0 0.0
    %649 = vmatpush.msra.mxu0 0.0
    %650 = vmatpush.msra.mxu0 0.0
    %651 = vmatpush.msra.mxu0 0.0
    %652 = vmatpush.msra.mxu0 0.0
    %653 = vmatpush.msra.mxu0 0.0
    %654 = vmatpush.msra.mxu0 0.0
    %655 = vmatpush.msra.mxu0 0.0
    %656 = vmatpush.msra.mxu0 0.0
    %657 = vmatpush.msra.mxu0 0.0
    %658 = vmatpush.msra.mxu0 0.0
    %659 = vmatpush.msra.mxu0 0.0
    %660 = vmatpush.msra.mxu0 0.0
    %661 = vmatpush.msra.mxu0 0.0
    %662 = vmatpush.msra.mxu0 %v639
    %663 = vmatpush.msra.mxu0 %v637
    %664 = vmatmul.f32.gmra.mxu0 %v643
    %v665 = vpop.f32.mrf.mxu0
    %v666 = vadd.f32 0.0, %v665
    %667 = vmatmul.f32.gmra.mxu0 %v646
    %v668 = vpop.f32.mrf.mxu0
    %v669 = vadd.f32 0.0, %v668
    %670 = vdwg.mxu0
    %671 = vrot.lane.b32.xlu0 %v166, 64
    %v672 = vpop.permute.xlu0 %671
    %673 = vrot.lane.b32.xlu0 %v169, 64
    %v674 = vpop.permute.xlu0 %673
    %675 = vrot.lane.b32.xlu0 %v217, 64
    %v676 = vpop.permute.xlu0 %675
    %677 = vrot.lane.b32.xlu0 %v220, 64
    %v678 = vpop.permute.xlu0 %677
    %v679 = vsel %vm279, %v672, 0
    %v681 = vsel %vm279, %v674, 0
    %v683 = vsel %vm279, %v676, 0
    %v685 = vsel %vm279, %v678, 0
    %687 = vmatpush.xpose.msra.mxu0 0.0
    %688 = vmatpush.xpose.msra.mxu0 0.0
    %689 = vmatpush.xpose.msra.mxu0 0.0
    %690 = vmatpush.xpose.msra.mxu0 0.0
    %691 = vmatpush.xpose.msra.mxu0 0.0
    %692 = vmatpush.xpose.msra.mxu0 0.0
    %693 = vmatpush.xpose.msra.mxu0 0.0
    %694 = vmatpush.xpose.msra.mxu0 0.0
    %695 = vmatpush.xpose.msra.mxu0 0.0
    %696 = vmatpush.xpose.msra.mxu0 0.0
    %697 = vmatpush.xpose.msra.mxu0 0.0
    %698 = vmatpush.xpose.msra.mxu0 0.0
    %699 = vmatpush.xpose.msra.mxu0 0.0
    %700 = vmatpush.xpose.msra.mxu0 0.0
    %701 = vmatpush.xpose.msra.mxu0 %v685
    %702 = vmatpush.xpose.msra.mxu0 %v683
    %703 = vmatmul.f32.gmra.mxu0 %v679
    %v704 = vpop.f32.mrf.mxu0
    %v705 = vadd.f32 0.0, %v704
    %706 = vmatmul.f32.gmra.mxu0 %v681
    %v707 = vpop.f32.mrf.mxu0
    %v708 = vadd.f32 0.0, %v707
    %709 = vdwg.mxu0
    %710 = vrot.lane.b32.xlu0 %v172, 64
    %v711 = vpop.permute.xlu0 %710
    %712 = vrot.lane.b32.xlu0 %v175, 64
    %v713 = vpop.permute.xlu0 %712
    %714 = vrot.lane.b32.xlu0 %v223, 64
    %v715 = vpop.permute.xlu0 %714
    %716 = vrot.lane.b32.xlu0 %v226, 64
    %v717 = vpop.permute.xlu0 %716
    %v718 = vsel %vm279, %v711, 0
    %v720 = vsel %vm279, %v713, 0
    %v722 = vsel %vm279, %v715, 0
    %v724 = vsel %vm279, %v717, 0
    %726 = vmatpush.xpose.msra.mxu0 0.0
    %727 = vmatpush.xpose.msra.mxu0 0.0
    %728 = vmatpush.xpose.msra.mxu0 0.0
    %729 = vmatpush.xpose.msra.mxu0 0.0
    %730 = vmatpush.xpose.msra.mxu0 0.0
    %731 = vmatpush.xpose.msra.mxu0 0.0
    %732 = vmatpush.xpose.msra.mxu0 0.0
    %733 = vmatpush.xpose.msra.mxu0 0.0
    %734 = vmatpush.xpose.msra.mxu0 0.0
    %735 = vmatpush.xpose.msra.mxu0 0.0
    %736 = vmatpush.xpose.msra.mxu0 0.0
    %737 = vmatpush.xpose.msra.mxu0 0.0
    %738 = vmatpush.xpose.msra.mxu0 0.0
    %739 = vmatpush.xpose.msra.mxu0 0.0
    %740 = vmatpush.xpose.msra.mxu0 %v724
    %741 = vmatpush.xpose.msra.mxu0 %v722
    %742 = vmatmul.f32.gmra.mxu0 %v718
    %v743 = vpop.f32.mrf.mxu0
    %v744 = vadd.f32 0.0, %v743
    %745 = vmatmul.f32.gmra.mxu0 %v720
    %v746 = vpop.f32.mrf.mxu0
    %v747 = vadd.f32 0.0, %v746
    %748 = vdwg.mxu0
    %v749 = vmul.f32 %v705, 0.17677669
    %v750 = vmul.f32 %v708, 0.17677669
    %v751 = vmul.f32 %v744, 0.17677669
    %v752 = vmul.f32 %v747, 0.17677669
    %v753 = vadd.f32 %v749, %v356
    %v754 = vadd.f32 %v750, %v356
    %v755 = vadd.f32 %v751, %v357
    %v756 = vadd.f32 %v752, %v357
    %v757 = vsel %vm364, %v753, -inf
    %758 = vmax.xlane.f32.xlu0 %v757
    %v759 = vpop.xlane.xlu0 %758
    %v760 = vsel %vm364, %v754, -inf
    %761 = vmax.xlane.f32.xlu0 %v760
    %v762 = vpop.xlane.xlu0 %761
    %v763 = vsel %vm364, %v755, -inf
    %764 = vmax.xlane.f32.xlu0 %v763
    %v765 = vpop.xlane.xlu0 %764
    %v766 = vsel %vm364, %v756, -inf
    %767 = vmax.xlane.f32.xlu0 %v766
    %v768 = vpop.xlane.xlu0 %767
    %v769 = vsub.f32 %v753, %v759
    %v770 = vsub.f32 %v754, %v762
    %v771 = vsub.f32 %v755, %v765
    %v772 = vsub.f32 %v756, %v768
    %v773 = vmul.f32 %v769, 1.442695
    %v774 = vpow.pop %v773
    %v775 = vmul.f32 %v770, 1.442695
    %v776 = vpow.pop %v775
    %v777 = vmul.f32 %v771, 1.442695
    %v778 = vpow.pop %v777
    %v779 = vmul.f32 %v772, 1.442695
    %v780 = vpow.pop %v779
    %v781 = vsel %vm364, %v774, 0.0
    %782 = vadd.xlane.f32.xlu0 %v781
    %v783 = vpop.xlane.xlu0 %782
    %v784 = vsel %vm364, %v776, 0.0
    %785 = vadd.xlane.f32.xlu0 %v784
    %v786 = vpop.xlane.xlu0 %785
    %v787 = vsel %vm364, %v778, 0.0
    %788 = vadd.xlane.f32.xlu0 %v787
    %v789 = vpop.xlane.xlu0 %788
    %v790 = vsel %vm364, %v780, 0.0
    %791 = vadd.xlane.f32.xlu0 %v790
    %v792 = vpop.xlane.xlu0 %791
    %v793 = vrcp.pop %v783
    %v794 = vrcp.pop %v786
    %v795 = vrcp.pop %v789
    %v796 = vrcp.pop %v792
    %v797 = vmul.f32 %v774, %v793
    %v798 = vmul.f32 %v776, %v794
    %v799 = vmul.f32 %v778, %v795
    %v800 = vmul.f32 %v780, %v796
    %801 = vrot.lane.b32.xlu0 %v268, 64
    %v802 = vpop.permute.xlu0 %801
    %803 = vrot.lane.b32.xlu0 %v271, 64
    %v804 = vpop.permute.xlu0 %803
    %v808 = vsel %vm364, %v797, 0
    %v811 = vsel %vm364, %v798, 0
    %813 = vmatpush.msra.mxu0 0.0
    %814 = vmatpush.msra.mxu0 0.0
    %815 = vmatpush.msra.mxu0 0.0
    %816 = vmatpush.msra.mxu0 0.0
    %817 = vmatpush.msra.mxu0 0.0
    %818 = vmatpush.msra.mxu0 0.0
    %819 = vmatpush.msra.mxu0 0.0
    %820 = vmatpush.msra.mxu0 0.0
    %821 = vmatpush.msra.mxu0 0.0
    %822 = vmatpush.msra.mxu0 0.0
    %823 = vmatpush.msra.mxu0 0.0
    %824 = vmatpush.msra.mxu0 0.0
    %825 = vmatpush.msra.mxu0 0.0
    %826 = vmatpush.msra.mxu0 0.0
    %827 = vmatpush.msra.mxu0 %v804
    %828 = vmatpush.msra.mxu0 %v802
    %829 = vmatmul.f32.gmra.mxu0 %v808
    %v830 = vpop.f32.mrf.mxu0
    %v831 = vadd.f32 0.0, %v830
    %832 = vmatmul.f32.gmra.mxu0 %v811
    %v833 = vpop.f32.mrf.mxu0
    %v834 = vadd.f32 0.0, %v833
    %835 = vdwg.mxu0
    %836 = vrot.lane.b32.xlu0 %v274, 64
    %v837 = vpop.permute.xlu0 %836
    %838 = vrot.lane.b32.xlu0 %v277, 64
    %v839 = vpop.permute.xlu0 %838
    %v843 = vsel %vm364, %v799, 0
    %v846 = vsel %vm364, %v800, 0
    %848 = vmatpush.msra.mxu0 0.0
    %849 = vmatpush.msra.mxu0 0.0
    %850 = vmatpush.msra.mxu0 0.0
    %851 = vmatpush.msra.mxu0 0.0
    %852 = vmatpush.msra.mxu0 0.0
    %853 = vmatpush.msra.mxu0 0.0
    %854 = vmatpush.msra.mxu0 0.0
    %855 = vmatpush.msra.mxu0 0.0
    %856 = vmatpush.msra.mxu0 0.0
    %857 = vmatpush.msra.mxu0 0.0
    %858 = vmatpush.msra.mxu0 0.0
    %859 = vmatpush.msra.mxu0 0.0
    %860 = vmatpush.msra.mxu0 0.0
    %861 = vmatpush.msra.mxu0 0.0
    %862 = vmatpush.msra.mxu0 %v839
    %863 = vmatpush.msra.mxu0 %v837
    %864 = vmatmul.f32.gmra.mxu0 %v843
    %v865 = vpop.f32.mrf.mxu0
    %v866 = vadd.f32 0.0, %v865
    %867 = vmatmul.f32.gmra.mxu0 %v846
    %v868 = vpop.f32.mrf.mxu0
    %v869 = vadd.f32 0.0, %v868
    %870 = vdwg.mxu0
    %871 = vrot.lane.b32.xlu0 %v166, 32
    %v872 = vpop.permute.xlu0 %871
    %873 = vrot.lane.b32.xlu0 %v169, 32
    %v874 = vpop.permute.xlu0 %873
    %875 = vrot.lane.b32.xlu0 %v217, 32
    %v876 = vpop.permute.xlu0 %875
    %877 = vrot.lane.b32.xlu0 %v220, 32
    %v878 = vpop.permute.xlu0 %877
    %v879 = vsel %vm279, %v872, 0
    %v881 = vsel %vm279, %v874, 0
    %v883 = vsel %vm279, %v876, 0
    %v885 = vsel %vm279, %v878, 0
    %887 = vmatpush.xpose.msra.mxu0 0.0
    %888 = vmatpush.xpose.msra.mxu0 0.0
    %889 = vmatpush.xpose.msra.mxu0 0.0
    %890 = vmatpush.xpose.msra.mxu0 0.0
    %891 = vmatpush.xpose.msra.mxu0 0.0
    %892 = vmatpush.xpose.msra.mxu0 0.0
    %893 = vmatpush.xpose.msra.mxu0 0.0
    %894 = vmatpush.xpose.msra.mxu0 0.0
    %895 = vmatpush.xpose.msra.mxu0 0.0
    %896 = vmatpush.xpose.msra.mxu0 0.0
    %897 = vmatpush.xpose.msra.mxu0 0.0
    %898 = vmatpush.xpose.msra.mxu0 0.0
    %899 = vmatpush.xpose.msra.mxu0 0.0
    %900 = vmatpush.xpose.msra.mxu0 0.0
    %901 = vmatpush.xpose.msra.mxu0 %v885
    %902 = vmatpush.xpose.msra.mxu0 %v883
    %903 = vmatmul.f32.gmra.mxu0 %v879
    %v904 = vpop.f32.mrf.mxu0
    %v905 = vadd.f32 0.0, %v904
    %906 = vmatmul.f32.gmra.mxu0 %v881
    %v907 = vpop.f32.mrf.mxu0
    %v908 = vadd.f32 0.0, %v907
    %909 = vdwg.mxu0
    %910 = vrot.lane.b32.xlu0 %v172, 32
    %v911 = vpop.permute.xlu0 %910
    %912 = vrot.lane.b32.xlu0 %v175, 32
    %v913 = vpop.permute.xlu0 %912
    %914 = vrot.lane.b32.xlu0 %v223, 32
    %v915 = vpop.permute.xlu0 %914
    %916 = vrot.lane.b32.xlu0 %v226, 32
    %v917 = vpop.permute.xlu0 %916
    %v918 = vsel %vm279, %v911, 0
    %v920 = vsel %vm279, %v913, 0
    %v922 = vsel %vm279, %v915, 0
    %v924 = vsel %vm279, %v917, 0
    %926 = vmatpush.xpose.msra.mxu0 0.0
    %927 = vmatpush.xpose.msra.mxu0 0.0
    %928 = vmatpush.xpose.msra.mxu0 0.0
    %929 = vmatpush.xpose.msra.mxu0 0.0
    %930 = vmatpush.xpose.msra.mxu0 0.0
    %931 = vmatpush.xpose.msra.mxu0 0.0
    %932 = vmatpush.xpose.msra.mxu0 0.0
    %933 = vmatpush.xpose.msra.mxu0 0.0
    %934 = vmatpush.xpose.msra.mxu0 0.0
    %935 = vmatpush.xpose.msra.mxu0 0.0
    %936 = vmatpush.xpose.msra.mxu0 0.0
    %937 = vmatpush.xpose.msra.mxu0 0.0
    %938 = vmatpush.xpose.msra.mxu0 0.0
    %939 = vmatpush.xpose.msra.mxu0 0.0
    %940 = vmatpush.xpose.msra.mxu0 %v924
    %941 = vmatpush.xpose.msra.mxu0 %v922
    %942 = vmatmul.f32.gmra.mxu0 %v918
    %v943 = vpop.f32.mrf.mxu0
    %v944 = vadd.f32 0.0, %v943
    %945 = vmatmul.f32.gmra.mxu0 %v920
    %v946 = vpop.f32.mrf.mxu0
    %v947 = vadd.f32 0.0, %v946
    %948 = vdwg.mxu0
    %v949 = vmul.f32 %v905, 0.17677669
    %v950 = vmul.f32 %v908, 0.17677669
    %v951 = vmul.f32 %v944, 0.17677669
    %v952 = vmul.f32 %v947, 0.17677669
    %v953 = vadd.f32 %v949, %v356
    %v954 = vadd.f32 %v950, %v356
    %v955 = vadd.f32 %v951, %v357
    %v956 = vadd.f32 %v952, %v357
    %v957 = vsel %vm364, %v953, -inf
    %958 = vmax.xlane.f32.xlu0 %v957
    %v959 = vpop.xlane.xlu0 %958
    %v960 = vsel %vm364, %v954, -inf
    %961 = vmax.xlane.f32.xlu0 %v960
    %v962 = vpop.xlane.xlu0 %961
    %v963 = vsel %vm364, %v955, -inf
    %964 = vmax.xlane.f32.xlu0 %v963
    %v965 = vpop.xlane.xlu0 %964
    %v966 = vsel %vm364, %v956, -inf
    %967 = vmax.xlane.f32.xlu0 %v966
    %v968 = vpop.xlane.xlu0 %967
    %v969 = vsub.f32 %v953, %v959
    %v970 = vsub.f32 %v954, %v962
    %v971 = vsub.f32 %v955, %v965
    %v972 = vsub.f32 %v956, %v968
    %v973 = vmul.f32 %v969, 1.442695
    %v974 = vpow.pop %v973
    %v975 = vmul.f32 %v970, 1.442695
    %v976 = vpow.pop %v975
    %v977 = vmul.f32 %v971, 1.442695
    %v978 = vpow.pop %v977
    %v979 = vmul.f32 %v972, 1.442695
    %v980 = vpow.pop %v979
    %v981 = vsel %vm364, %v974, 0.0
    %982 = vadd.xlane.f32.xlu0 %v981
    %v983 = vpop.xlane.xlu0 %982
    %v984 = vsel %vm364, %v976, 0.0
    %985 = vadd.xlane.f32.xlu0 %v984
    %v986 = vpop.xlane.xlu0 %985
    %v987 = vsel %vm364, %v978, 0.0
    %988 = vadd.xlane.f32.xlu0 %v987
    %v989 = vpop.xlane.xlu0 %988
    %v990 = vsel %vm364, %v980, 0.0
    %991 = vadd.xlane.f32.xlu0 %v990
    %v992 = vpop.xlane.xlu0 %991
    %v993 = vrcp.pop %v983
    %v994 = vrcp.pop %v986
    %v995 = vrcp.pop %v989
    %v996 = vrcp.pop %v992
    %v997 = vmul.f32 %v974, %v993
    %v998 = vmul.f32 %v976, %v994
    %v999 = vmul.f32 %v978, %v995
    %v1000 = vmul.f32 %v980, %v996
    %1001 = vrot.lane.b32.xlu0 %v268, 32
    %v1002 = vpop.permute.xlu0 %1001
    %1003 = vrot.lane.b32.xlu0 %v271, 32
    %v1004 = vpop.permute.xlu0 %1003
    %v1008 = vsel %vm364, %v997, 0
    %v1011 = vsel %vm364, %v998, 0
    %1013 = vmatpush.msra.mxu0 0.0
    %1014 = vmatpush.msra.mxu0 0.0
    %1015 = vmatpush.msra.mxu0 0.0
    %1016 = vmatpush.msra.mxu0 0.0
    %1017 = vmatpush.msra.mxu0 0.0
    %1018 = vmatpush.msra.mxu0 0.0
    %1019 = vmatpush.msra.mxu0 0.0
    %1020 = vmatpush.msra.mxu0 0.0
    %1021 = vmatpush.msra.mxu0 0.0
    %1022 = vmatpush.msra.mxu0 0.0
    %1023 = vmatpush.msra.mxu0 0.0
    %1024 = vmatpush.msra.mxu0 0.0
    %1025 = vmatpush.msra.mxu0 0.0
    %1026 = vmatpush.msra.mxu0 0.0
    %1027 = vmatpush.msra.mxu0 %v1004
    %1028 = vmatpush.msra.mxu0 %v1002
    %1029 = vmatmul.f32.gmra.mxu0 %v1008
    %v1030 = vpop.f32.mrf.mxu0
    %v1031 = vadd.f32 0.0, %v1030
    %1032 = vmatmul.f32.gmra.mxu0 %v1011
    %v1033 = vpop.f32.mrf.mxu0
    %v1034 = vadd.f32 0.0, %v1033
    %1035 = vdwg.mxu0
    %1036 = vrot.lane.b32.xlu0 %v274, 32
    %v1037 = vpop.permute.xlu0 %1036
    %1038 = vrot.lane.b32.xlu0 %v277, 32
    %v1039 = vpop.permute.xlu0 %1038
    %v1043 = vsel %vm364, %v999, 0
    %v1046 = vsel %vm364, %v1000, 0
    %1048 = vmatpush.msra.mxu0 0.0
    %1049 = vmatpush.msra.mxu0 0.0
    %1050 = vmatpush.msra.mxu0 0.0
    %1051 = vmatpush.msra.mxu0 0.0
    %1052 = vmatpush.msra.mxu0 0.0
    %1053 = vmatpush.msra.mxu0 0.0
    %1054 = vmatpush.msra.mxu0 0.0
    %1055 = vmatpush.msra.mxu0 0.0
    %1056 = vmatpush.msra.mxu0 0.0
    %1057 = vmatpush.msra.mxu0 0.0
    %1058 = vmatpush.msra.mxu0 0.0
    %1059 = vmatpush.msra.mxu0 0.0
    %1060 = vmatpush.msra.mxu0 0.0
    %1061 = vmatpush.msra.mxu0 0.0
    %1062 = vmatpush.msra.mxu0 %v1039
    %1063 = vmatpush.msra.mxu0 %v1037
    %1064 = vmatmul.f32.gmra.mxu0 %v1043
    %v1065 = vpop.f32.mrf.mxu0
    %v1066 = vadd.f32 0.0, %v1065
    %1067 = vmatmul.f32.gmra.mxu0 %v1046
    %v1068 = vpop.f32.mrf.mxu0
    %v1069 = vadd.f32 0.0, %v1068
    %1070 = vdwg.mxu0
    %1075 = vrot.lane.b32.xlu0 %v629, 32
    %v1076 = vpop.permute.xlu0 %1075
    %1077 = vrot.lane.b32.xlu0 %v632, 32
    %v1078 = vpop.permute.xlu0 %1077
    %1079 = vrot.lane.b32.xlu0 %v666, 32
    %v1080 = vpop.permute.xlu0 %1079
    %1081 = vrot.lane.b32.xlu0 %v669, 32
    %v1082 = vpop.permute.xlu0 %1081
    %1091 = vrot.lane.b32.xlu0 %v831, 64
    %v1092 = vpop.permute.xlu0 %1091
    %1093 = vrot.lane.b32.xlu0 %v834, 64
    %v1094 = vpop.permute.xlu0 %1093
    %1095 = vrot.lane.b32.xlu0 %v866, 64
    %v1096 = vpop.permute.xlu0 %1095
    %1097 = vrot.lane.b32.xlu0 %v869, 64
    %v1098 = vpop.permute.xlu0 %1097
    %1107 = vrot.lane.b32.xlu0 %v1031, 96
    %v1108 = vpop.permute.xlu0 %1107
    %1109 = vrot.lane.b32.xlu0 %v1034, 96
    %v1110 = vpop.permute.xlu0 %1109
    %1111 = vrot.lane.b32.xlu0 %v1066, 96
    %v1112 = vpop.permute.xlu0 %1111
    %1113 = vrot.lane.b32.xlu0 %v1069, 96
    %v1114 = vpop.permute.xlu0 %1113
    %v1119 = vsel %vm279, %v433, %v1076
    %v1120 = vsel %vm279, %v436, %v1078
    %v1121 = vsel %vm279, %v462, %v1080
    %v1122 = vsel %vm279, %v465, %v1082
    %vm1123 = vcmask 523264
    %v1124 = vsel %vm1123, %v1119, %v1092
    %v1125 = vsel %vm1123, %v1120, %v1094
    %v1126 = vsel %vm1123, %v1121, %v1096
    %v1127 = vsel %vm1123, %v1122, %v1098
    %vm1128 = vcmask 785408
    %v1129 = vsel %vm1128, %v1124, %v1108
    %v1130 = vsel %vm1128, %v1125, %v1110
    %v1131 = vsel %vm1128, %v1126, %v1112
    %v1132 = vsel %vm1128, %v1127, %v1114
    %v1133 = vld [vmem:[#allocation11] sm:$0xff]
    %v1134 = vld [vmem:[#allocation11 + $0x8] sm:$0xff]
    %v1135 = vld [vmem:[#allocation11 + $0x10] sm:$0xff]
    %v1136 = vld [vmem:[#allocation11 + $0x18] sm:$0xff]
    %v1137 = vld [vmem:[#allocation11 + $0x20] sm:$0xff]
    %v1138 = vld [vmem:[#allocation11 + $0x28] sm:$0xff]
    %v1139 = vld [vmem:[#allocation11 + $0x30] sm:$0xff]
    %v1140 = vld [vmem:[#allocation11 + $0x38] sm:$0xff]
    %v1141 = vld [vmem:[#allocation11 + $0x40] sm:$0xff]
    %v1142 = vld [vmem:[#allocation11 + $0x48] sm:$0xff]
    %v1143 = vld [vmem:[#allocation11 + $0x50] sm:$0xff]
    %v1144 = vld [vmem:[#allocation11 + $0x58] sm:$0xff]
    %v1145 = vld [vmem:[#allocation11 + $0x60] sm:$0xff]
    %v1146 = vld [vmem:[#allocation11 + $0x68] sm:$0xff]
    %v1147 = vld [vmem:[#allocation11 + $0x70] sm:$0xff]
    %v1148 = vld [vmem:[#allocation11 + $0x78] sm:$0xff]
    %v1149 = vld [vmem:[%s7] sm:$0x1]
    %v1151 = vperm.slane %v1149, 0
    %1153 = vmatpush.msra.mxu0 %v1148
    %1154 = vmatpush.msra.mxu0 %v1147
    %1155 = vmatpush.msra.mxu0 %v1146
    %1156 = vmatpush.msra.mxu0 %v1145
    %1157 = vmatpush.msra.mxu0 %v1144
    %1158 = vmatpush.msra.mxu0 %v1143
    %1159 = vmatpush.msra.mxu0 %v1142
    %1160 = vmatpush.msra.mxu0 %v1141
    %1161 = vmatpush.msra.mxu0 %v1140
    %1162 = vmatpush.msra.mxu0 %v1139
    %1163 = vmatpush.msra.mxu0 %v1138
    %1164 = vmatpush.msra.mxu0 %v1137
    %1165 = vmatpush.msra.mxu0 %v1136
    %1166 = vmatpush.msra.mxu0 %v1135
    %1167 = vmatpush.msra.mxu0 %v1134
    %1168 = vmatpush.msra.mxu0 %v1133
    %1169 = vmatmul.f32.gmra.mxu0 %v1129
    %v1170 = vpop.f32.mrf.mxu0
    %v1171 = vadd.f32 %v1151, %v1170
    %1172 = vmatmul.f32.gmra.mxu0 %v1130
    %v1173 = vpop.f32.mrf.mxu0
    %v1174 = vadd.f32 %v1151, %v1173
    %1175 = vmatmul.f32.gmra.mxu0 %v1131
    %v1176 = vpop.f32.mrf.mxu0
    %v1177 = vadd.f32 %v1151, %v1176
    %1178 = vmatmul.f32.gmra.mxu0 %v1132
    %v1179 = vpop.f32.mrf.mxu0
    %v1180 = vadd.f32 %v1151, %v1179
    %1181 = vdwg.mxu0
    %1182 = vst [vmem:[#allocation13] sm:$0xff] %v1171
    %1183 = vst [vmem:[#allocation13 + $0x8] sm:$0xff] %v1174
    %1184 = vst [vmem:[#allocation13 + $0x10] sm:$0xff] %v1177
    %1185 = vst [vmem:[#allocation13 + $0x18] sm:$0xff] %v1180
    // Predicated region
    $region58: #{tpu_custom_call.1} parent=1 // pred_check
      _
    $region59: #{tpu_custom_call.1} parent=1 // pred_check_branch
      %1187 = sbr.rel (0) target = $region61
    $region60: #{tpu_custom_call.1} parent=1 // pred_region
      %1189 = vsyncadd [#allocation4], 0
      %s1190 = sshll.u32 [#allocation13], 4
      %s1191 = int_to_ptr.vmem [resolvable:$true] %s1190
      %s1192 = sshll.u32 %s8, 4
      %s1193 = int_to_ptr.hbm [resolvable:$true] %s1192
      %1198 = dma.vmem_to_hbm [thread:$0]  %s1191, 512, %s1193, [#allocation4], 128, 128, 8
    $region61: #{tpu_custom_call.1} parent=1 // pred_fallthru
      _
    // Predicated region
    $region62: #{tpu_custom_call.1} parent=1 // pred_check
      _
    $region63: #{tpu_custom_call.1} parent=1 // pred_check_branch
      %1200 = sbr.rel (0) target = $region65
    $region64: #{tpu_custom_call.1} parent=1 // pred_region
      %1202 = dma.done [#allocation4], 512
    $region65: #{tpu_custom_call.1} parent=1 // pred_fallthru
      _
    %1203 = vsyncpa [#allocation3], 1
    %1204 = vsyncpa [#allocation6], 1
    %1205 = vsyncpa [#allocation9], 1
    %1206 = vsyncpa [#allocation12], 1
    %1207 = vsyncpa [#allocation4], 1

</llo_original>
